<compile_context>
chip_gen: v7x
topology: tpu7x:2x2x1
jax: 0.10.0
libtpu: 0.0.40
codegen_flags: <defaults>
</compile_context>

<pallas_src>
import numpy as np
import jax
import jax.numpy as jnp
from jax import lax
from jax.experimental import pallas as pl
from jax.experimental.pallas import tpu as pltpu


def _make_kernel(TD, build_lr, build_rl):
    def kernel(bins_ref, left_ref, right_ref, *out_refs):
        db = pl.program_id(1)                       # disparity block index

        B, Fk, TH, W = left_ref.shape
        M = B * Fk * TH
        # (M, W) views: layout-preserving because tile_h is a multiple of the
        # sublane packing for the dtype (picked by the wrapper), so no copies.
        left = left_ref[...].reshape(M, W)
        right = right_ref[...].reshape(M, W)
        zero = jnp.zeros((), dtype=left.dtype)

        # lane (column) index; (1, W) only, broadcast over rows inside jnp.where
        wi = lax.broadcasted_iota(jnp.int32, (1, W), 1)

        # Static unroll over the TD bins of this block (TD is small).
        for t in range(TD):
            d = bins_ref[db * TD + t]               # SMEM scalar (dynamic index)
            idx = 0
            if build_lr:
                lr_ref = out_refs[idx]
                idx += 1
                # dest[w] <- right[w - d]; wrapped lanes (w < d) zero-filled,
                # matching the PyTorch slice assignment's zero fill.
                right_sh = pltpu.roll(right, d, 1)
                m = wi >= d
                lr_ref[:, :Fk, t] = (
                    jnp.where(m, left, zero).reshape(B, Fk, TH, W).astype(lr_ref.dtype))
                lr_ref[:, Fk:, t] = (
                    jnp.where(m, right_sh, zero).reshape(B, Fk, TH, W).astype(lr_ref.dtype))
            if build_rl:
                rl_ref = out_refs[idx]
                # dest[w] <- left[w + d]; wrapped lanes (w >= W - d) zero-filled.
                left_sh = pltpu.roll(left, (W - d) % W, 1)
                m = wi < W - d
                rl_ref[:, :Fk, t] = (
                    jnp.where(m, left_sh, zero).reshape(B, Fk, TH, W).astype(rl_ref.dtype))
                rl_ref[:, Fk:, t] = (
                    jnp.where(m, right, zero).reshape(B, Fk, TH, W).astype(rl_ref.dtype))

    return kernel


def _vmem_capacity_bytes(default=64 * 1024 * 1024):
    """Generation-aware VMEM capacity; conservative (v7x-sized) fallback."""
    try:
        info = pltpu.get_tpu_info()
        cap = getattr(info, "vmem_capacity_bytes", None)
        return int(cap) if cap else default
    except Exception:
        return default


def _pick_tiles(B, F, H, W, D, in_itemsize, out_itemsize, n_out, budget_bytes):
    """Pick (tile_h, tile_d) maximizing the output DMA block within budget.

    Preferences: (1) keep the grid splittable (>= 2 steps) so both v7x
    TensorCores get work, (2) biggest output block (fewer steps, bigger DMAs),
    (3) fewest total steps.  tile_h candidates are dtype-aligned so sub-32-bit
    dtypes keep unmasked packed-sublane stores.
    """
    sub = {1: 32, 2: 16}.get(min(in_itemsize, out_itemsize), 8)
    th_cands = sorted({th for th in range(sub, H + 1, sub) if H % th == 0} | {H},
                      reverse=True)
    td_cands = sorted({td for td in range(1, D + 1) if D % td == 0}, reverse=True)

    def vmem_need(th, td):
        in_blk = B * F * th * W * in_itemsize
        out_blk = B * 2 * F * td * th * W * out_itemsize
        # 2 inputs + n_out outputs, each double-buffered by the pipeline.
        return 2 * 2 * in_blk + n_out * 2 * out_blk

    best = None  # (key, th, td)
    for th in th_cands:
        for td in td_cands:
            if vmem_need(th, td) > budget_bytes:
                continue
            steps = (H // th) * (D // td)
            out_blk = B * 2 * F * td * th * W * out_itemsize
            key = (steps >= 2, out_blk, -steps)
            if best is None or key > best[0]:
                best = (key, th, td)
    if best is None:
        return th_cands[-1], 1   # smallest blocks; rely on vmem_limit headroom
    return best[1], best[2]


def concat_volume(features_left, features_right, bins, build_lr=True, build_rl=True,
                  tile_h=None, tile_d=None, out_dtype=None):
    """Pallas equivalent of ConcatVolume._build_concat_volume (forward pass)."""
    if not (build_lr or build_rl):
        return None, None

    B, F, H, W = features_left.shape
    assert features_right.shape == (B, F, H, W)
    if W % 128 != 0:
        # TODO(synk): pad W up to a multiple of 128 lanes and slice the outputs
        # back; pltpu.roll wraps on the 128-lane layout, so a non-multiple W
        # would shift / zero-fill the wrong columns.
        raise NotImplementedError(
            "concat_volume requires W to be a multiple of 128 (got W=%d)" % W)

    D = int(bins.shape[0])
    bins = jnp.asarray(bins).astype(jnp.int32)

    # The PyTorch loop only covers 0 <= d < W; guard when bins are concrete.
    bins_host = None
    try:
        bins_host = np.asarray(jax.device_get(bins))
    except Exception:
        bins_host = None
    if bins_host is not None and not ((bins_host >= 0).all() and (bins_host < W).all()):
        raise ValueError("concat_volume: bins must satisfy 0 <= d < W")

    in_dt = jnp.dtype(features_left.dtype)
    out_dt = jnp.dtype(out_dtype) if out_dtype is not None else in_dt
    n_out = int(build_lr) + int(build_rl)

    cap = _vmem_capacity_bytes()
    if tile_h is None or tile_d is None:
        th, td = _pick_tiles(B, F, H, W, D, in_dt.itemsize, out_dt.itemsize, n_out,
                             budget_bytes=int(cap * 0.7))
        tile_h = th if tile_h is None else tile_h
        tile_d = td if tile_d is None else tile_d
    assert H % tile_h == 0 and D % tile_d == 0
    nh, nd = H // tile_h, D // tile_d

    in_spec = pl.BlockSpec((B, F, tile_h, W), lambda h, db, bins_ref: (0, 0, h, 0))
    out_spec = pl.BlockSpec((B, 2 * F, tile_d, tile_h, W),
                            lambda h, db, bins_ref: (0, 0, db, h, 0))
    out_struct = jax.ShapeDtypeStruct((B, 2 * F, D, H, W), out_dt)

    grid_spec = pltpu.PrefetchScalarGridSpec(
        num_scalar_prefetch=1,
        # D-block innermost: input index_map is independent of it, so the input
        # tiles stay VMEM-resident across the whole disparity sweep.
        grid=(nh, nd),
        in_specs=[in_spec, in_spec],
        out_specs=[out_spec] * n_out,
    )

    # Advisory cost: pure HBM traffic, zero FLOPs.
    in_bytes = 2 * B * F * H * W * in_dt.itemsize
    out_bytes = n_out * B * 2 * F * D * H * W * out_dt.itemsize
    cost = pl.CostEstimate(flops=0, transcendentals=0,
                           bytes_accessed=in_bytes + out_bytes)

    vmem_limit = max(min(int(cap * 0.8), cap - 8 * 1024 * 1024), 1024 * 1024)

    res = pl.pallas_call(
        _make_kernel(tile_d, build_lr, build_rl),
        out_shape=tuple([out_struct] * n_out),
        grid_spec=grid_spec,
        compiler_params=pltpu.CompilerParams(
            dimension_semantics=("parallel", "parallel"),
            vmem_limit_bytes=vmem_limit),
        cost_estimate=cost,
    )(bins, features_left, features_right)

    lr = res[0] if build_lr else None
    rl = res[-1] if build_rl else None
    return lr, rl


def ref_concat_volume(left, right, bins):
    """Pure-numpy reference mirroring the PyTorch loop."""
    B, F, H, W = left.shape
    D = bins.shape[0]
    lr = np.zeros((B, 2 * F, D, H, W), dtype=left.dtype)
    rl = np.zeros_like(lr)
    for i, d in enumerate(bins):
        d = int(d)
        if d > 0:
            lr[:, :F, i, :, d:] = left[:, :, :, d:]
            lr[:, F:, i, :, d:] = right[:, :, :, :-d]
            rl[:, :F, i, :, :-d] = left[:, :, :, d:]
            rl[:, F:, i, :, :-d] = right[:, :, :, :-d]
        else:
            lr[:, :F, i] = left
            lr[:, F:, i] = right
            rl[:, :F, i] = left
            rl[:, F:, i] = right
    return lr, rl


if __name__ == "__main__":
    B, F, H, W, D = 2, 4, 16, 128, 8
    key = jax.random.PRNGKey(0)
    k1, k2 = jax.random.split(key)
    features_left = jax.random.normal(k1, (B, F, H, W), dtype=jnp.float32)
    features_right = jax.random.normal(k2, (B, F, H, W), dtype=jnp.float32)
    bins = jnp.arange(D, dtype=jnp.int32)   # deterministic bins (module param)

    lr_ref, rl_ref = ref_concat_volume(
        np.asarray(features_left), np.asarray(features_right), np.asarray(bins))

    # Auto-tiled (generation-aware VMEM budget, D-blocked output tiles).
    lr, rl = concat_volume(features_left, features_right, bins)
    jax.block_until_ready((lr, rl))
    assert np.allclose(np.asarray(lr), lr_ref), "LR volume mismatch (auto tiles)"
    assert np.allclose(np.asarray(rl), rl_ref), "RL volume mismatch (auto tiles)"

    # Explicitly exercise a multi-step grid (nh=2, D-blocks=4).
    lr2, rl2 = concat_volume(features_left, features_right, bins, tile_h=8, tile_d=2)
    jax.block_until_ready((lr2, rl2))
    assert np.allclose(np.asarray(lr2), lr_ref), "LR volume mismatch (tiled grid)"
    assert np.allclose(np.asarray(rl2), rl_ref), "RL volume mismatch (tiled grid)"

    # Single-volume variants (build flags honored inside the kernel launch).
    lr_only, none_rl = concat_volume(features_left, features_right, bins, build_rl=False)
    none_lr, rl_only = concat_volume(features_left, features_right, bins, build_lr=False)
    jax.block_until_ready((lr_only, rl_only))
    assert none_rl is None and none_lr is None
    assert np.allclose(np.asarray(lr_only), lr_ref), "LR-only volume mismatch"
    assert np.allclose(np.asarray(rl_only), rl_ref), "RL-only volume mismatch"

    print("KERNEL_OK")
</pallas_src>

<mosaic_0001>
module attributes {stable_mosaic.version = 11 : i64} {
  func.func @kernel(%arg0: i32, %arg1: i32, %arg2: memref<8xi32, #tpu.memory_space<smem>>, %arg3: memref<2x4x16x128xf32, #tpu.memory_space<vmem>>, %arg4: memref<2x4x16x128xf32, #tpu.memory_space<vmem>>, %arg5: memref<2x8x4x16x128xf32, #tpu.memory_space<vmem>>, %arg6: memref<2x8x4x16x128xf32, #tpu.memory_space<vmem>>) attributes {dimension_semantics = [#tpu.dimension_semantics<parallel>, #tpu.dimension_semantics<parallel>], iteration_bounds = array<i64: 1, 2>, scalar_prefetch = 1 : i64, scratch_operands = 0 : i64, tpu.core_type = #tpu.core_type<tc>, window_params = [{transform_indices = @transform_0, window_bounds = array<i64: 2, 4, 16, 128>}, {transform_indices = @transform_1, window_bounds = array<i64: 2, 4, 16, 128>}, {transform_indices = @transform_2, window_bounds = array<i64: 2, 8, 4, 16, 128>}, {transform_indices = @transform_3, window_bounds = array<i64: 2, 8, 4, 16, 128>}]} {
    %c0 = arith.constant 0 : index
    %c0_0 = arith.constant 0 : index
    %c0_1 = arith.constant 0 : index
    %c0_2 = arith.constant 0 : index
    %0 = vector.load %arg3[%c0, %c0_0, %c0_1, %c0_2] : memref<2x4x16x128xf32, #tpu.memory_space<vmem>>, vector<2x4x16x128xf32>
    %1 = vector.shape_cast %0 : vector<2x4x16x128xf32> to vector<128x128xf32>
    %c0_3 = arith.constant 0 : index
    %c0_4 = arith.constant 0 : index
    %c0_5 = arith.constant 0 : index
    %c0_6 = arith.constant 0 : index
    %2 = vector.load %arg4[%c0_3, %c0_4, %c0_5, %c0_6] : memref<2x4x16x128xf32, #tpu.memory_space<vmem>>, vector<2x4x16x128xf32>
    %3 = vector.shape_cast %2 : vector<2x4x16x128xf32> to vector<128x128xf32>
    %4 = tpu.iota {dimensions = array<i32: 1>} : vector<1x128xi32>
    %c4_i32 = arith.constant 4 : i32
    %5 = arith.muli %arg1, %c4_i32 : i32
    %c0_i32 = arith.constant 0 : i32
    %6 = arith.addi %5, %c0_i32 : i32
    %7 = arith.index_cast %6 : i32 to index
    %8 = memref.load %arg2[%7] : memref<8xi32, #tpu.memory_space<smem>>
    %9 = tpu.dynamic_rotate %3 by %8 dim 1 : vector<128x128xf32>, i32 -> vector<128x128xf32>
    %10 = vector.broadcast %8 : i32 to vector<1x128xi32>
    %11 = arith.cmpi sge, %4, %10 : vector<1x128xi32>
    %cst = arith.constant 0.000000e+00 : f32
    %12 = vector.shape_cast %11 : vector<1x128xi1> to vector<1x128xi1>
    %13 = vector.broadcast %12 : vector<1x128xi1> to vector<128x128xi1>
    %14 = vector.broadcast %cst : f32 to vector<128x128xf32>
    %15 = arith.select %13, %1, %14 : vector<128x128xi1>, vector<128x128xf32>
    %16 = vector.shape_cast %15 : vector<128x128xf32> to vector<2x4x16x128xf32>
    %c0_7 = arith.constant 0 : index
    %c0_8 = arith.constant 0 : index
    %c0_9 = arith.constant 0 : index
    %c0_10 = arith.constant 0 : index
    %c0_11 = arith.constant 0 : index
    %17 = vector.load %arg5[%c0_7, %c0_8, %c0_9, %c0_10, %c0_11] : memref<2x8x4x16x128xf32, #tpu.memory_space<vmem>>, vector<2x4x1x16x128xf32>
    %18 = vector.shape_cast %17 : vector<2x4x1x16x128xf32> to vector<2x4x16x128xf32>
    %19 = vector.shape_cast %16 : vector<2x4x16x128xf32> to vector<2x4x1x16x128xf32>
    tpu.vector_store %arg5[%c0_7, %c0_8, %c0_9, %c0_10, %c0_11], %19 {strides = array<i32>} : memref<2x8x4x16x128xf32, #tpu.memory_space<vmem>>, vector<2x4x1x16x128xf32>,
    %cst_12 = arith.constant 0.000000e+00 : f32
    %20 = vector.shape_cast %11 : vector<1x128xi1> to vector<1x128xi1>
    %21 = vector.broadcast %20 : vector<1x128xi1> to vector<128x128xi1>
    %22 = vector.broadcast %cst_12 : f32 to vector<128x128xf32>
    %23 = arith.select %21, %9, %22 : vector<128x128xi1>, vector<128x128xf32>
    %24 = vector.shape_cast %23 : vector<128x128xf32> to vector<2x4x16x128xf32>
    %c0_13 = arith.constant 0 : index
    %c4 = arith.constant 4 : index
    %c0_14 = arith.constant 0 : index
    %c0_15 = arith.constant 0 : index
    %c0_16 = arith.constant 0 : index
    %25 = vector.load %arg5[%c0_13, %c4, %c0_14, %c0_15, %c0_16] : memref<2x8x4x16x128xf32, #tpu.memory_space<vmem>>, vector<2x4x1x16x128xf32>
    %26 = vector.shape_cast %25 : vector<2x4x1x16x128xf32> to vector<2x4x16x128xf32>
    %27 = vector.shape_cast %24 : vector<2x4x16x128xf32> to vector<2x4x1x16x128xf32>
    tpu.vector_store %arg5[%c0_13, %c4, %c0_14, %c0_15, %c0_16], %27 {strides = array<i32>} : memref<2x8x4x16x128xf32, #tpu.memory_space<vmem>>, vector<2x4x1x16x128xf32>,
    %c128_i32 = arith.constant 128 : i32
    %28 = arith.subi %c128_i32, %8 : i32
    %c128_i32_17 = arith.constant 128 : i32
    %c0_i32_18 = arith.constant 0 : i32
    %29 = arith.cmpi eq, %c128_i32_17, %c0_i32_18 : i32
    %c1_i32 = arith.constant 1 : i32
    %30 = arith.select %29, %c1_i32, %c128_i32_17 : i32
    %31 = arith.remsi %28, %30 : i32
    %c0_i32_19 = arith.constant 0 : i32
    %32 = arith.cmpi ne, %31, %c0_i32_19 : i32
    %c0_i32_20 = arith.constant 0 : i32
    %33 = arith.cmpi slt, %31, %c0_i32_20 : i32
    %c0_i32_21 = arith.constant 0 : i32
    %34 = arith.cmpi slt, %30, %c0_i32_21 : i32
    %35 = arith.xori %33, %34 : i1
    %36 = arith.andi %35, %32 : i1
    %37 = arith.addi %31, %30 : i32
    %38 = arith.select %36, %37, %31 : i32
    %39 = tpu.dynamic_rotate %1 by %38 dim 1 : vector<128x128xf32>, i32 -> vector<128x128xf32>
    %c128_i32_22 = arith.constant 128 : i32
    %40 = arith.subi %c128_i32_22, %8 : i32
    %41 = vector.broadcast %40 : i32 to vector<1x128xi32>
    %42 = arith.cmpi slt, %4, %41 : vector<1x128xi32>
    %cst_23 = arith.constant 0.000000e+00 : f32
    %43 = vector.shape_cast %42 : vector<1x128xi1> to vector<1x128xi1>
    %44 = vector.broadcast %43 : vector<1x128xi1> to vector<128x128xi1>
    %45 = vector.broadcast %cst_23 : f32 to vector<128x128xf32>
    %46 = arith.select %44, %39, %45 : vector<128x128xi1>, vector<128x128xf32>
    %47 = vector.shape_cast %46 : vector<128x128xf32> to vector<2x4x16x128xf32>
    %c0_24 = arith.constant 0 : index
    %c0_25 = arith.constant 0 : index
    %c0_26 = arith.constant 0 : index
    %c0_27 = arith.constant 0 : index
    %c0_28 = arith.constant 0 : index
    %48 = vector.load %arg6[%c0_24, %c0_25, %c0_26, %c0_27, %c0_28] : memref<2x8x4x16x128xf32, #tpu.memory_space<vmem>>, vector<2x4x1x16x128xf32>
    %49 = vector.shape_cast %48 : vector<2x4x1x16x128xf32> to vector<2x4x16x128xf32>
    %50 = vector.shape_cast %47 : vector<2x4x16x128xf32> to vector<2x4x1x16x128xf32>
    tpu.vector_store %arg6[%c0_24, %c0_25, %c0_26, %c0_27, %c0_28], %50 {strides = array<i32>} : memref<2x8x4x16x128xf32, #tpu.memory_space<vmem>>, vector<2x4x1x16x128xf32>,
    %cst_29 = arith.constant 0.000000e+00 : f32
    %51 = vector.shape_cast %42 : vector<1x128xi1> to vector<1x128xi1>
    %52 = vector.broadcast %51 : vector<1x128xi1> to vector<128x128xi1>
    %53 = vector.broadcast %cst_29 : f32 to vector<128x128xf32>
    %54 = arith.select %52, %3, %53 : vector<128x128xi1>, vector<128x128xf32>
    %55 = vector.shape_cast %54 : vector<128x128xf32> to vector<2x4x16x128xf32>
    %c0_30 = arith.constant 0 : index
    %c4_31 = arith.constant 4 : index
    %c0_32 = arith.constant 0 : index
    %c0_33 = arith.constant 0 : index
    %c0_34 = arith.constant 0 : index
    %56 = vector.load %arg6[%c0_30, %c4_31, %c0_32, %c0_33, %c0_34] : memref<2x8x4x16x128xf32, #tpu.memory_space<vmem>>, vector<2x4x1x16x128xf32>
    %57 = vector.shape_cast %56 : vector<2x4x1x16x128xf32> to vector<2x4x16x128xf32>
    %58 = vector.shape_cast %55 : vector<2x4x16x128xf32> to vector<2x4x1x16x128xf32>
    tpu.vector_store %arg6[%c0_30, %c4_31, %c0_32, %c0_33, %c0_34], %58 {strides = array<i32>} : memref<2x8x4x16x128xf32, #tpu.memory_space<vmem>>, vector<2x4x1x16x128xf32>,
    %c4_i32_35 = arith.constant 4 : i32
    %59 = arith.muli %arg1, %c4_i32_35 : i32
    %c1_i32_36 = arith.constant 1 : i32
    %60 = arith.addi %59, %c1_i32_36 : i32
    %61 = arith.index_cast %60 : i32 to index
    %62 = memref.load %arg2[%61] : memref<8xi32, #tpu.memory_space<smem>>
    %63 = tpu.dynamic_rotate %3 by %62 dim 1 : vector<128x128xf32>, i32 -> vector<128x128xf32>
    %64 = vector.broadcast %62 : i32 to vector<1x128xi32>
    %65 = arith.cmpi sge, %4, %64 : vector<1x128xi32>
    %cst_37 = arith.constant 0.000000e+00 : f32
    %66 = vector.shape_cast %65 : vector<1x128xi1> to vector<1x128xi1>
    %67 = vector.broadcast %66 : vector<1x128xi1> to vector<128x128xi1>
    %68 = vector.broadcast %cst_37 : f32 to vector<128x128xf32>
    %69 = arith.select %67, %1, %68 : vector<128x128xi1>, vector<128x128xf32>
    %70 = vector.shape_cast %69 : vector<128x128xf32> to vector<2x4x16x128xf32>
    %c0_38 = arith.constant 0 : index
    %c0_39 = arith.constant 0 : index
    %c1 = arith.constant 1 : index
    %c0_40 = arith.constant 0 : index
    %c0_41 = arith.constant 0 : index
    %71 = vector.load %arg5[%c0_38, %c0_39, %c1, %c0_40, %c0_41] : memref<2x8x4x16x128xf32, #tpu.memory_space<vmem>>, vector<2x4x1x16x128xf32>
    %72 = vector.shape_cast %71 : vector<2x4x1x16x128xf32> to vector<2x4x16x128xf32>
    %73 = vector.shape_cast %70 : vector<2x4x16x128xf32> to vector<2x4x1x16x128xf32>
    tpu.vector_store %arg5[%c0_38, %c0_39, %c1, %c0_40, %c0_41], %73 {strides = array<i32>} : memref<2x8x4x16x128xf32, #tpu.memory_space<vmem>>, vector<2x4x1x16x128xf32>,
    %cst_42 = arith.constant 0.000000e+00 : f32
    %74 = vector.shape_cast %65 : vector<1x128xi1> to vector<1x128xi1>
    %75 = vector.broadcast %74 : vector<1x128xi1> to vector<128x128xi1>
    %76 = vector.broadcast %cst_42 : f32 to vector<128x128xf32>
    %77 = arith.select %75, %63, %76 : vector<128x128xi1>, vector<128x128xf32>
    %78 = vector.shape_cast %77 : vector<128x128xf32> to vector<2x4x16x128xf32>
    %c0_43 = arith.constant 0 : index
    %c4_44 = arith.constant 4 : index
    %c1_45 = arith.constant 1 : index
    %c0_46 = arith.constant 0 : index
    %c0_47 = arith.constant 0 : index
    %79 = vector.load %arg5[%c0_43, %c4_44, %c1_45, %c0_46, %c0_47] : memref<2x8x4x16x128xf32, #tpu.memory_space<vmem>>, vector<2x4x1x16x128xf32>
    %80 = vector.shape_cast %79 : vector<2x4x1x16x128xf32> to vector<2x4x16x128xf32>
    %81 = vector.shape_cast %78 : vector<2x4x16x128xf32> to vector<2x4x1x16x128xf32>
    tpu.vector_store %arg5[%c0_43, %c4_44, %c1_45, %c0_46, %c0_47], %81 {strides = array<i32>} : memref<2x8x4x16x128xf32, #tpu.memory_space<vmem>>, vector<2x4x1x16x128xf32>,
    %c128_i32_48 = arith.constant 128 : i32
    %82 = arith.subi %c128_i32_48, %62 : i32
    %c128_i32_49 = arith.constant 128 : i32
    %c0_i32_50 = arith.constant 0 : i32
    %83 = arith.cmpi eq, %c128_i32_49, %c0_i32_50 : i32
    %c1_i32_51 = arith.constant 1 : i32
    %84 = arith.select %83, %c1_i32_51, %c128_i32_49 : i32
    %85 = arith.remsi %82, %84 : i32
    %c0_i32_52 = arith.constant 0 : i32
    %86 = arith.cmpi ne, %85, %c0_i32_52 : i32
    %c0_i32_53 = arith.constant 0 : i32
    %87 = arith.cmpi slt, %85, %c0_i32_53 : i32
    %c0_i32_54 = arith.constant 0 : i32
    %88 = arith.cmpi slt, %84, %c0_i32_54 : i32
    %89 = arith.xori %87, %88 : i1
    %90 = arith.andi %89, %86 : i1
    %91 = arith.addi %85, %84 : i32
    %92 = arith.select %90, %91, %85 : i32
    %93 = tpu.dynamic_rotate %1 by %92 dim 1 : vector<128x128xf32>, i32 -> vector<128x128xf32>
    %c128_i32_55 = arith.constant 128 : i32
    %94 = arith.subi %c128_i32_55, %62 : i32
    %95 = vector.broadcast %94 : i32 to vector<1x128xi32>
    %96 = arith.cmpi slt, %4, %95 : vector<1x128xi32>
    %cst_56 = arith.constant 0.000000e+00 : f32
    %97 = vector.shape_cast %96 : vector<1x128xi1> to vector<1x128xi1>
    %98 = vector.broadcast %97 : vector<1x128xi1> to vector<128x128xi1>
    %99 = vector.broadcast %cst_56 : f32 to vector<128x128xf32>
    %100 = arith.select %98, %93, %99 : vector<128x128xi1>, vector<128x128xf32>
    %101 = vector.shape_cast %100 : vector<128x128xf32> to vector<2x4x16x128xf32>
    %c0_57 = arith.constant 0 : index
    %c0_58 = arith.constant 0 : index
    %c1_59 = arith.constant 1 : index
    %c0_60 = arith.constant 0 : index
    %c0_61 = arith.constant 0 : index
    %102 = vector.load %arg6[%c0_57, %c0_58, %c1_59, %c0_60, %c0_61] : memref<2x8x4x16x128xf32, #tpu.memory_space<vmem>>, vector<2x4x1x16x128xf32>
    %103 = vector.shape_cast %102 : vector<2x4x1x16x128xf32> to vector<2x4x16x128xf32>
    %104 = vector.shape_cast %101 : vector<2x4x16x128xf32> to vector<2x4x1x16x128xf32>
    tpu.vector_store %arg6[%c0_57, %c0_58, %c1_59, %c0_60, %c0_61], %104 {strides = array<i32>} : memref<2x8x4x16x128xf32, #tpu.memory_space<vmem>>, vector<2x4x1x16x128xf32>,
    %cst_62 = arith.constant 0.000000e+00 : f32
    %105 = vector.shape_cast %96 : vector<1x128xi1> to vector<1x128xi1>
    %106 = vector.broadcast %105 : vector<1x128xi1> to vector<128x128xi1>
    %107 = vector.broadcast %cst_62 : f32 to vector<128x128xf32>
    %108 = arith.select %106, %3, %107 : vector<128x128xi1>, vector<128x128xf32>
    %109 = vector.shape_cast %108 : vector<128x128xf32> to vector<2x4x16x128xf32>
    %c0_63 = arith.constant 0 : index
    %c4_64 = arith.constant 4 : index
    %c1_65 = arith.constant 1 : index
    %c0_66 = arith.constant 0 : index
    %c0_67 = arith.constant 0 : index
    %110 = vector.load %arg6[%c0_63, %c4_64, %c1_65, %c0_66, %c0_67] : memref<2x8x4x16x128xf32, #tpu.memory_space<vmem>>, vector<2x4x1x16x128xf32>
    %111 = vector.shape_cast %110 : vector<2x4x1x16x128xf32> to vector<2x4x16x128xf32>
    %112 = vector.shape_cast %109 : vector<2x4x16x128xf32> to vector<2x4x1x16x128xf32>
    tpu.vector_store %arg6[%c0_63, %c4_64, %c1_65, %c0_66, %c0_67], %112 {strides = array<i32>} : memref<2x8x4x16x128xf32, #tpu.memory_space<vmem>>, vector<2x4x1x16x128xf32>,
    %c4_i32_68 = arith.constant 4 : i32
    %113 = arith.muli %arg1, %c4_i32_68 : i32
    %c2_i32 = arith.constant 2 : i32
    %114 = arith.addi %113, %c2_i32 : i32
    %115 = arith.index_cast %114 : i32 to index
    %116 = memref.load %arg2[%115] : memref<8xi32, #tpu.memory_space<smem>>
    %117 = tpu.dynamic_rotate %3 by %116 dim 1 : vector<128x128xf32>, i32 -> vector<128x128xf32>
    %118 = vector.broadcast %116 : i32 to vector<1x128xi32>
    %119 = arith.cmpi sge, %4, %118 : vector<1x128xi32>
    %cst_69 = arith.constant 0.000000e+00 : f32
    %120 = vector.shape_cast %119 : vector<1x128xi1> to vector<1x128xi1>
    %121 = vector.broadcast %120 : vector<1x128xi1> to vector<128x128xi1>
    %122 = vector.broadcast %cst_69 : f32 to vector<128x128xf32>
    %123 = arith.select %121, %1, %122 : vector<128x128xi1>, vector<128x128xf32>
    %124 = vector.shape_cast %123 : vector<128x128xf32> to vector<2x4x16x128xf32>
    %c0_70 = arith.constant 0 : index
    %c0_71 = arith.constant 0 : index
    %c2 = arith.constant 2 : index
    %c0_72 = arith.constant 0 : index
    %c0_73 = arith.constant 0 : index
    %125 = vector.load %arg5[%c0_70, %c0_71, %c2, %c0_72, %c0_73] : memref<2x8x4x16x128xf32, #tpu.memory_space<vmem>>, vector<2x4x1x16x128xf32>
    %126 = vector.shape_cast %125 : vector<2x4x1x16x128xf32> to vector<2x4x16x128xf32>
    %127 = vector.shape_cast %124 : vector<2x4x16x128xf32> to vector<2x4x1x16x128xf32>
    tpu.vector_store %arg5[%c0_70, %c0_71, %c2, %c0_72, %c0_73], %127 {strides = array<i32>} : memref<2x8x4x16x128xf32, #tpu.memory_space<vmem>>, vector<2x4x1x16x128xf32>,
    %cst_74 = arith.constant 0.000000e+00 : f32
    %128 = vector.shape_cast %119 : vector<1x128xi1> to vector<1x128xi1>
    %129 = vector.broadcast %128 : vector<1x128xi1> to vector<128x128xi1>
    %130 = vector.broadcast %cst_74 : f32 to vector<128x128xf32>
    %131 = arith.select %129, %117, %130 : vector<128x128xi1>, vector<128x128xf32>
    %132 = vector.shape_cast %131 : vector<128x128xf32> to vector<2x4x16x128xf32>
    %c0_75 = arith.constant 0 : index
    %c4_76 = arith.constant 4 : index
    %c2_77 = arith.constant 2 : index
    %c0_78 = arith.constant 0 : index
    %c0_79 = arith.constant 0 : index
    %133 = vector.load %arg5[%c0_75, %c4_76, %c2_77, %c0_78, %c0_79] : memref<2x8x4x16x128xf32, #tpu.memory_space<vmem>>, vector<2x4x1x16x128xf32>
    %134 = vector.shape_cast %133 : vector<2x4x1x16x128xf32> to vector<2x4x16x128xf32>
    %135 = vector.shape_cast %132 : vector<2x4x16x128xf32> to vector<2x4x1x16x128xf32>
    tpu.vector_store %arg5[%c0_75, %c4_76, %c2_77, %c0_78, %c0_79], %135 {strides = array<i32>} : memref<2x8x4x16x128xf32, #tpu.memory_space<vmem>>, vector<2x4x1x16x128xf32>,
    %c128_i32_80 = arith.constant 128 : i32
    %136 = arith.subi %c128_i32_80, %116 : i32
    %c128_i32_81 = arith.constant 128 : i32
    %c0_i32_82 = arith.constant 0 : i32
    %137 = arith.cmpi eq, %c128_i32_81, %c0_i32_82 : i32
    %c1_i32_83 = arith.constant 1 : i32
    %138 = arith.select %137, %c1_i32_83, %c128_i32_81 : i32
    %139 = arith.remsi %136, %138 : i32
    %c0_i32_84 = arith.constant 0 : i32
    %140 = arith.cmpi ne, %139, %c0_i32_84 : i32
    %c0_i32_85 = arith.constant 0 : i32
    %141 = arith.cmpi slt, %139, %c0_i32_85 : i32
    %c0_i32_86 = arith.constant 0 : i32
    %142 = arith.cmpi slt, %138, %c0_i32_86 : i32
    %143 = arith.xori %141, %142 : i1
    %144 = arith.andi %143, %140 : i1
    %145 = arith.addi %139, %138 : i32
    %146 = arith.select %144, %145, %139 : i32
    %147 = tpu.dynamic_rotate %1 by %146 dim 1 : vector<128x128xf32>, i32 -> vector<128x128xf32>
    %c128_i32_87 = arith.constant 128 : i32
    %148 = arith.subi %c128_i32_87, %116 : i32
    %149 = vector.broadcast %148 : i32 to vector<1x128xi32>
    %150 = arith.cmpi slt, %4, %149 : vector<1x128xi32>
    %cst_88 = arith.constant 0.000000e+00 : f32
    %151 = vector.shape_cast %150 : vector<1x128xi1> to vector<1x128xi1>
    %152 = vector.broadcast %151 : vector<1x128xi1> to vector<128x128xi1>
    %153 = vector.broadcast %cst_88 : f32 to vector<128x128xf32>
    %154 = arith.select %152, %147, %153 : vector<128x128xi1>, vector<128x128xf32>
    %155 = vector.shape_cast %154 : vector<128x128xf32> to vector<2x4x16x128xf32>
    %c0_89 = arith.constant 0 : index
    %c0_90 = arith.constant 0 : index
    %c2_91 = arith.constant 2 : index
    %c0_92 = arith.constant 0 : index
    %c0_93 = arith.constant 0 : index
    %156 = vector.load %arg6[%c0_89, %c0_90, %c2_91, %c0_92, %c0_93] : memref<2x8x4x16x128xf32, #tpu.memory_space<vmem>>, vector<2x4x1x16x128xf32>
    %157 = vector.shape_cast %156 : vector<2x4x1x16x128xf32> to vector<2x4x16x128xf32>
    %158 = vector.shape_cast %155 : vector<2x4x16x128xf32> to vector<2x4x1x16x128xf32>
    tpu.vector_store %arg6[%c0_89, %c0_90, %c2_91, %c0_92, %c0_93], %158 {strides = array<i32>} : memref<2x8x4x16x128xf32, #tpu.memory_space<vmem>>, vector<2x4x1x16x128xf32>,
    %cst_94 = arith.constant 0.000000e+00 : f32
    %159 = vector.shape_cast %150 : vector<1x128xi1> to vector<1x128xi1>
    %160 = vector.broadcast %159 : vector<1x128xi1> to vector<128x128xi1>
    %161 = vector.broadcast %cst_94 : f32 to vector<128x128xf32>
    %162 = arith.select %160, %3, %161 : vector<128x128xi1>, vector<128x128xf32>
    %163 = vector.shape_cast %162 : vector<128x128xf32> to vector<2x4x16x128xf32>
    %c0_95 = arith.constant 0 : index
    %c4_96 = arith.constant 4 : index
    %c2_97 = arith.constant 2 : index
    %c0_98 = arith.constant 0 : index
    %c0_99 = arith.constant 0 : index
    %164 = vector.load %arg6[%c0_95, %c4_96, %c2_97, %c0_98, %c0_99] : memref<2x8x4x16x128xf32, #tpu.memory_space<vmem>>, vector<2x4x1x16x128xf32>
    %165 = vector.shape_cast %164 : vector<2x4x1x16x128xf32> to vector<2x4x16x128xf32>
    %166 = vector.shape_cast %163 : vector<2x4x16x128xf32> to vector<2x4x1x16x128xf32>
    tpu.vector_store %arg6[%c0_95, %c4_96, %c2_97, %c0_98, %c0_99], %166 {strides = array<i32>} : memref<2x8x4x16x128xf32, #tpu.memory_space<vmem>>, vector<2x4x1x16x128xf32>,
    %c4_i32_100 = arith.constant 4 : i32
    %167 = arith.muli %arg1, %c4_i32_100 : i32
    %c3_i32 = arith.constant 3 : i32
    %168 = arith.addi %167, %c3_i32 : i32
    %169 = arith.index_cast %168 : i32 to index
    %170 = memref.load %arg2[%169] : memref<8xi32, #tpu.memory_space<smem>>
    %171 = tpu.dynamic_rotate %3 by %170 dim 1 : vector<128x128xf32>, i32 -> vector<128x128xf32>
    %172 = vector.broadcast %170 : i32 to vector<1x128xi32>
    %173 = arith.cmpi sge, %4, %172 : vector<1x128xi32>
    %cst_101 = arith.constant 0.000000e+00 : f32
    %174 = vector.shape_cast %173 : vector<1x128xi1> to vector<1x128xi1>
    %175 = vector.broadcast %174 : vector<1x128xi1> to vector<128x128xi1>
    %176 = vector.broadcast %cst_101 : f32 to vector<128x128xf32>
    %177 = arith.select %175, %1, %176 : vector<128x128xi1>, vector<128x128xf32>
    %178 = vector.shape_cast %177 : vector<128x128xf32> to vector<2x4x16x128xf32>
    %c0_102 = arith.constant 0 : index
    %c0_103 = arith.constant 0 : index
    %c3 = arith.constant 3 : index
    %c0_104 = arith.constant 0 : index
    %c0_105 = arith.constant 0 : index
    %179 = vector.load %arg5[%c0_102, %c0_103, %c3, %c0_104, %c0_105] : memref<2x8x4x16x128xf32, #tpu.memory_space<vmem>>, vector<2x4x1x16x128xf32>
    %180 = vector.shape_cast %179 : vector<2x4x1x16x128xf32> to vector<2x4x16x128xf32>
    %181 = vector.shape_cast %178 : vector<2x4x16x128xf32> to vector<2x4x1x16x128xf32>
    tpu.vector_store %arg5[%c0_102, %c0_103, %c3, %c0_104, %c0_105], %181 {strides = array<i32>} : memref<2x8x4x16x128xf32, #tpu.memory_space<vmem>>, vector<2x4x1x16x128xf32>,
    %cst_106 = arith.constant 0.000000e+00 : f32
    %182 = vector.shape_cast %173 : vector<1x128xi1> to vector<1x128xi1>
    %183 = vector.broadcast %182 : vector<1x128xi1> to vector<128x128xi1>
    %184 = vector.broadcast %cst_106 : f32 to vector<128x128xf32>
    %185 = arith.select %183, %171, %184 : vector<128x128xi1>, vector<128x128xf32>
    %186 = vector.shape_cast %185 : vector<128x128xf32> to vector<2x4x16x128xf32>
    %c0_107 = arith.constant 0 : index
    %c4_108 = arith.constant 4 : index
    %c3_109 = arith.constant 3 : index
    %c0_110 = arith.constant 0 : index
    %c0_111 = arith.constant 0 : index
    %187 = vector.load %arg5[%c0_107, %c4_108, %c3_109, %c0_110, %c0_111] : memref<2x8x4x16x128xf32, #tpu.memory_space<vmem>>, vector<2x4x1x16x128xf32>
    %188 = vector.shape_cast %187 : vector<2x4x1x16x128xf32> to vector<2x4x16x128xf32>
    %189 = vector.shape_cast %186 : vector<2x4x16x128xf32> to vector<2x4x1x16x128xf32>
    tpu.vector_store %arg5[%c0_107, %c4_108, %c3_109, %c0_110, %c0_111], %189 {strides = array<i32>} : memref<2x8x4x16x128xf32, #tpu.memory_space<vmem>>, vector<2x4x1x16x128xf32>,
    %c128_i32_112 = arith.constant 128 : i32
    %190 = arith.subi %c128_i32_112, %170 : i32
    %c128_i32_113 = arith.constant 128 : i32
    %c0_i32_114 = arith.constant 0 : i32
    %191 = arith.cmpi eq, %c128_i32_113, %c0_i32_114 : i32
    %c1_i32_115 = arith.constant 1 : i32
    %192 = arith.select %191, %c1_i32_115, %c128_i32_113 : i32
    %193 = arith.remsi %190, %192 : i32
    %c0_i32_116 = arith.constant 0 : i32
    %194 = arith.cmpi ne, %193, %c0_i32_116 : i32
    %c0_i32_117 = arith.constant 0 : i32
    %195 = arith.cmpi slt, %193, %c0_i32_117 : i32
    %c0_i32_118 = arith.constant 0 : i32
    %196 = arith.cmpi slt, %192, %c0_i32_118 : i32
    %197 = arith.xori %195, %196 : i1
    %198 = arith.andi %197, %194 : i1
    %199 = arith.addi %193, %192 : i32
    %200 = arith.select %198, %199, %193 : i32
    %201 = tpu.dynamic_rotate %1 by %200 dim 1 : vector<128x128xf32>, i32 -> vector<128x128xf32>
    %c128_i32_119 = arith.constant 128 : i32
    %202 = arith.subi %c128_i32_119, %170 : i32
    %203 = vector.broadcast %202 : i32 to vector<1x128xi32>
    %204 = arith.cmpi slt, %4, %203 : vector<1x128xi32>
    %cst_120 = arith.constant 0.000000e+00 : f32
    %205 = vector.shape_cast %204 : vector<1x128xi1> to vector<1x128xi1>
    %206 = vector.broadcast %205 : vector<1x128xi1> to vector<128x128xi1>
    %207 = vector.broadcast %cst_120 : f32 to vector<128x128xf32>
    %208 = arith.select %206, %201, %207 : vector<128x128xi1>, vector<128x128xf32>
    %209 = vector.shape_cast %208 : vector<128x128xf32> to vector<2x4x16x128xf32>
    %c0_121 = arith.constant 0 : index
    %c0_122 = arith.constant 0 : index
    %c3_123 = arith.constant 3 : index
    %c0_124 = arith.constant 0 : index
    %c0_125 = arith.constant 0 : index
    %210 = vector.load %arg6[%c0_121, %c0_122, %c3_123, %c0_124, %c0_125] : memref<2x8x4x16x128xf32, #tpu.memory_space<vmem>>, vector<2x4x1x16x128xf32>
    %211 = vector.shape_cast %210 : vector<2x4x1x16x128xf32> to vector<2x4x16x128xf32>
    %212 = vector.shape_cast %209 : vector<2x4x16x128xf32> to vector<2x4x1x16x128xf32>
    tpu.vector_store %arg6[%c0_121, %c0_122, %c3_123, %c0_124, %c0_125], %212 {strides = array<i32>} : memref<2x8x4x16x128xf32, #tpu.memory_space<vmem>>, vector<2x4x1x16x128xf32>,
    %cst_126 = arith.constant 0.000000e+00 : f32
    %213 = vector.shape_cast %204 : vector<1x128xi1> to vector<1x128xi1>
    %214 = vector.broadcast %213 : vector<1x128xi1> to vector<128x128xi1>
    %215 = vector.broadcast %cst_126 : f32 to vector<128x128xf32>
    %216 = arith.select %214, %3, %215 : vector<128x128xi1>, vector<128x128xf32>
    %217 = vector.shape_cast %216 : vector<128x128xf32> to vector<2x4x16x128xf32>
    %c0_127 = arith.constant 0 : index
    %c4_128 = arith.constant 4 : index
    %c3_129 = arith.constant 3 : index
    %c0_130 = arith.constant 0 : index
    %c0_131 = arith.constant 0 : index
    %218 = vector.load %arg6[%c0_127, %c4_128, %c3_129, %c0_130, %c0_131] : memref<2x8x4x16x128xf32, #tpu.memory_space<vmem>>, vector<2x4x1x16x128xf32>
    %219 = vector.shape_cast %218 : vector<2x4x1x16x128xf32> to vector<2x4x16x128xf32>
    %220 = vector.shape_cast %217 : vector<2x4x16x128xf32> to vector<2x4x1x16x128xf32>
    tpu.vector_store %arg6[%c0_127, %c4_128, %c3_129, %c0_130, %c0_131], %220 {strides = array<i32>} : memref<2x8x4x16x128xf32, #tpu.memory_space<vmem>>, vector<2x4x1x16x128xf32>,
    return
  }
  func.func @transform_0(%arg0: i32, %arg1: i32, %arg2: memref<8xi32, #tpu.memory_space<smem>>) -> (i32, i32, i32, i32) {
    %c0_i32 = arith.constant 0 : i32
    %c0_i32_0 = arith.constant 0 : i32
    %c0_i32_1 = arith.constant 0 : i32
    %c0_i32_2 = arith.constant 0 : i32
    return %c0_i32, %c0_i32_0, %arg0, %c0_i32_1 : i32, i32, i32, i32
  }
  func.func @transform_1(%arg0: i32, %arg1: i32, %arg2: memref<8xi32, #tpu.memory_space<smem>>) -> (i32, i32, i32, i32) {
    %c0_i32 = arith.constant 0 : i32
    %c0_i32_0 = arith.constant 0 : i32
    %c0_i32_1 = arith.constant 0 : i32
    %c0_i32_2 = arith.constant 0 : i32
    return %c0_i32, %c0_i32_0, %arg0, %c0_i32_1 : i32, i32, i32, i32
  }
  func.func @transform_2(%arg0: i32, %arg1: i32, %arg2: memref<8xi32, #tpu.memory_space<smem>>) -> (i32, i32, i32, i32, i32) {
    %c0_i32 = arith.constant 0 : i32
    %c0_i32_0 = arith.constant 0 : i32
    %c0_i32_1 = arith.constant 0 : i32
    %c0_i32_2 = arith.constant 0 : i32
    return %c0_i32, %c0_i32_0, %arg1, %arg0, %c0_i32_1 : i32, i32, i32, i32, i32
  }
  func.func @transform_3(%arg0: i32, %arg1: i32, %arg2: memref<8xi32, #tpu.memory_space<smem>>) -> (i32, i32, i32, i32, i32) {
    %c0_i32 = arith.constant 0 : i32
    %c0_i32_0 = arith.constant 0 : i32
    %c0_i32_1 = arith.constant 0 : i32
    %c0_i32_2 = arith.constant 0 : i32
    return %c0_i32, %c0_i32_0, %arg1, %arg0, %c0_i32_1 : i32, i32, i32, i32, i32
  }
}

</mosaic_0001>

<llo_original>
// kernel: tpu_custom_call.1
$region0: #{tpu_custom_call.1}
  #allocation0 [shape = 'u32[]', space=smem, size = 0x4, offset = 0x4, fixed_abs, tag = 'smem constant byte address 0x4 - core index']
  #allocation1 [shape = 'u32[144,128]{1,0:T(1,128)}', space=vmem, size = 0x12000, scoped, tag = 'internal scratch']
  #allocation2 [shape = 's32[1]{0}', space=sflag, size = 0x4, scoped, tag = 'scoped memory for tpu_custom_call.1']
  #allocation3 [shape = 'u8[512]{0}', space=smem, size = 0x200, scoped, tag = 'prefetched SMEM operand 0']
  #allocation12 [shape = 's32[]', space=sflag, size = 0x4, offset = 0, fixed_abs, tag = 'sflag constant byte address 0x0 - dummy sync flag']
  #allocation14 [shape = 's32[]', space=sflag, size = 0x4, offset = 0, fixed_abs, tag = 'sflag constant byte address 0x0 - dummy sync flag']
  %s0 = inlined_call_operand.hbm [shape: s32[8], index: 0, kind: input, shape index: {}]
  %s1 = inlined_call_operand.hbm [shape: f32[2,4,16,128], index: 1, kind: input, shape index: {}]
  %s2 = inlined_call_operand.hbm [shape: f32[2,4,16,128], index: 2, kind: input, shape index: {}]
  %s3 = inlined_call_operand.hbm [shape: f32[2,8,8,16,128], index: 3, kind: output, shape index: {0}]
  %s4 = inlined_call_operand.hbm [shape: f32[2,8,8,16,128], index: 4, kind: output, shape index: {1}]
  %5 = xla_tuple %s3, %s4
  %s6 = sld [smem:[#allocation0]]
  $region57: #{tpu_custom_call.1} parent=0
    _
  %s8 = ssub.s32 1, %s6
  %s9 = scalar_select 0, %s8, %s6
  %11 = dma.hbm_to_smem %s0, 16, [#allocation3], [#allocation2]
  %12 = dma.done [#allocation2], 16
  %13 = sfence
  $region1: #{tpu_custom_call.1} parent=0
    #allocation4 [shape = 'u8[65536]{0}', space=vmem, size = 0x10000, scoped, tag = 'input window, operand 1, single buffered']
    #allocation5 [shape = 's32[2]{0}', space=sflag, size = 0x8, scoped, tag = 'scoped memory for tpu_custom_call.1']
    #allocation6 [shape = 's32[2]{0}', space=sflag, size = 0x8, scoped, tag = 'scoped memory for tpu_custom_call.1']
    #allocation7 [shape = 'u8[65536]{0}', space=vmem, size = 0x10000, scoped, tag = 'input window, operand 2, single buffered']
    #allocation8 [shape = 's32[1]{0}', space=sflag, size = 0x4, scoped, tag = 'scoped memory for tpu_custom_call.1']
    #allocation9 [shape = 'u8[1048576]{0}', space=vmem, size = 0x100000, scoped, tag = 'output window, operand 0']
    #allocation10 [shape = 'u8[1048576]{0}', space=vmem, size = 0x100000, scoped, tag = 'output window, operand 1']
    #allocation11 [shape = 's32[2]{0}', space=sflag, size = 0x8, scoped, tag = 'scoped memory for tpu_custom_call.1']
    %14 = vsyncpa [#allocation5], 0
    %15 = vsyncpa [#allocation8], 0
    %16 = vsyncpa [#allocation6], 0
    %s17 = scalar_lea.sflag [#allocation6], 1
    %18 = vsyncpa %s17, 0
    %19 = vsyncpa [#allocation11], 0
    %s20 = scalar_lea.sflag [#allocation11], 1
    %21 = vsyncpa %s20, 0
    loop: start=0, step=1, limit=4
    $region2: #{tpu_custom_call.1} parent=1 // loop_pre_header
      _
    $region3: #{tpu_custom_call.1} parent=1 // loop_header
      %s23 = sphi 0, %s27
      %p24 = scmp.ge.s32.totalorder %s23, 4
      %s30 = sphi 0, %s42
      %s31 = sphi 0, %s38
      %s32 = sphi 0, %s30
      %s33 = sphi 0, %s31
      %s34 = sphi 0, %s32
      %s35 = sphi 0, %s33
      %s45 = sphi 0, %s47
      %s48 = sphi 0, %s45
      %s49 = sphi 0, %s48
      %s65 = sphi 0, %s49
      %s71 = sphi 0, %s73
      %s74 = sphi 0, %s71
      %s75 = sphi 0, %s74
      %s91 = sphi 0, %s75
      %s99 = sphi 0, %s101
      %s102 = sphi 0, %s99
      %s103 = sphi 0, %s102
      %s119 = sphi 0, %s103
      %s127 = sphi 0, %s129
      %s130 = sphi 0, %s127
      %s131 = sphi 0, %s130
      %s147 = sphi 0, %s131
    $region4: #{tpu_custom_call.1} parent=1 // loop_header_branch
      %26 = sbr.rel (%p24) target = $region8
    $region5: #{tpu_custom_call.1} parent=1 // loop_body
      %s28 = ssub.s32 %s23, 1
      %s29 = ssub.s32 %s23, 2
      %s36 = sadd.s32 1, %s31
      %p37 = scmp.ge.s32.totalorder %s36, 2
      %s38 = scalar_select %p37, 0, %s36
      %s39 = sadd.s32 1, %s30
      %s40 = scalar_select %p37, %s39, %s30
      %p41 = scmp.ge.s32.totalorder %s40, 1
      %s42 = scalar_select %p41, 0, %s40
      %s43 = ssub.s32 %s30, %s42
      %p44 = scmp.eq.s32.totalorder %s43, 0
      %s46 = sadd.s32 %s45, 1
      %s47 = scalar_select %p44, %s45, %s46
      %p50 = pneg %p44
      %p51 = scmp.eq.s32.totalorder %s23, 1
      %p52 = por %p50, %p51
      %p53 = scmp.ne.s32.totalorder %s45, %s48
      %p54 = scmp.eq.s32.totalorder %s23, 0
      %p55 = por %p53, %p54
      %p56 = scmp.ne.s32.totalorder %s45, %s48
      %p57 = scmp.eq.s32.totalorder %s28, 1
      %p58 = por %p56, %p57
      %p59 = scmp.ne.s32.totalorder %s48, %s49
      %p60 = scmp.eq.s32.totalorder %s28, 0
      %p61 = por %p59, %p60
      %p62 = scmp.ne.s32.totalorder %s48, %s49
      %p63 = scmp.eq.s32.totalorder %s29, 1
      %p64 = por %p62, %p63
      %p66 = scmp.ne.s32.totalorder %s49, %s65
      %p67 = scmp.eq.s32.totalorder %s29, 0
      %p68 = por %p66, %p67
      %s69 = ssub.s32 %s30, %s42
      %p70 = scmp.eq.s32.totalorder %s69, 0
      %s72 = sadd.s32 %s71, 1
      %s73 = scalar_select %p70, %s71, %s72
      %p76 = pneg %p70
      %p77 = scmp.eq.s32.totalorder %s23, 1
      %p78 = por %p76, %p77
      %p79 = scmp.ne.s32.totalorder %s71, %s74
      %p80 = scmp.eq.s32.totalorder %s23, 0
      %p81 = por %p79, %p80
      %p82 = scmp.ne.s32.totalorder %s71, %s74
      %p83 = scmp.eq.s32.totalorder %s28, 1
      %p84 = por %p82, %p83
      %p85 = scmp.ne.s32.totalorder %s74, %s75
      %p86 = scmp.eq.s32.totalorder %s28, 0
      %p87 = por %p85, %p86
      %p88 = scmp.ne.s32.totalorder %s74, %s75
      %p89 = scmp.eq.s32.totalorder %s29, 1
      %p90 = por %p88, %p89
      %p92 = scmp.ne.s32.totalorder %s75, %s91
      %p93 = scmp.eq.s32.totalorder %s29, 0
      %p94 = por %p92, %p93
      %s95 = ssub.s32 %s31, %s38
      %s96 = ssub.s32 %s30, %s42
      %s97 = sor.u32 %s95, %s96
      %p98 = scmp.eq.s32.totalorder %s97, 0
      %s100 = sadd.s32 %s99, 1
      %s101 = scalar_select %p98, %s99, %s100
      %p104 = pneg %p98
      %p105 = scmp.eq.s32.totalorder %s23, 1
      %p106 = por %p104, %p105
      %p107 = scmp.ne.s32.totalorder %s99, %s102
      %p108 = scmp.eq.s32.totalorder %s23, 0
      %p109 = por %p107, %p108
      %p110 = scmp.ne.s32.totalorder %s99, %s102
      %p111 = scmp.eq.s32.totalorder %s28, 1
      %p112 = por %p110, %p111
      %p113 = scmp.ne.s32.totalorder %s102, %s103
      %p114 = scmp.eq.s32.totalorder %s28, 0
      %p115 = por %p113, %p114
      %p116 = scmp.ne.s32.totalorder %s102, %s103
      %p117 = scmp.eq.s32.totalorder %s29, 1
      %p118 = por %p116, %p117
      %p120 = scmp.ne.s32.totalorder %s103, %s119
      %p121 = scmp.eq.s32.totalorder %s29, 0
      %p122 = por %p120, %p121
      %s123 = ssub.s32 %s31, %s38
      %s124 = ssub.s32 %s30, %s42
      %s125 = sor.u32 %s123, %s124
      %p126 = scmp.eq.s32.totalorder %s125, 0
      %s128 = sadd.s32 %s127, 1
      %s129 = scalar_select %p126, %s127, %s128
      %p132 = pneg %p126
      %p133 = scmp.eq.s32.totalorder %s23, 1
      %p134 = por %p132, %p133
      %p135 = scmp.ne.s32.totalorder %s127, %s130
      %p136 = scmp.eq.s32.totalorder %s23, 0
      %p137 = por %p135, %p136
      %p138 = scmp.ne.s32.totalorder %s127, %s130
      %p139 = scmp.eq.s32.totalorder %s28, 1
      %p140 = por %p138, %p139
      %p141 = scmp.ne.s32.totalorder %s130, %s131
      %p142 = scmp.eq.s32.totalorder %s28, 0
      %p143 = por %p141, %p142
      %p144 = scmp.ne.s32.totalorder %s130, %s131
      %p145 = scmp.eq.s32.totalorder %s29, 1
      %p146 = por %p144, %p145
      %p148 = scmp.ne.s32.totalorder %s131, %s147
      %p149 = scmp.eq.s32.totalorder %s29, 0
      %p150 = por %p148, %p149
      %p151 = scmp.le.s32.totalorder 1, %s23
      %p152 = scmp.lt.s32.totalorder %s23, 3
      %p153 = pnand %p151, %p152
      %p154 = pneg %p153
      // Predicated region
      $region9: #{tpu_custom_call.1} parent=5 // pred_check
        _
      $region10: #{tpu_custom_call.1} parent=5 // pred_check_branch
        %156 = sbr.rel (%p153) target = $region12
      $region11: #{tpu_custom_call.1} parent=5 // pred_region
        %s157 = ssub.s32 %s23, 1
        // Predicated region
        $region13: #{tpu_custom_call.1} parent=11 // pred_check
          %p158 = pneg %p61
        $region14: #{tpu_custom_call.1} parent=11 // pred_check_branch
          %160 = sbr.rel (%p158) target = $region16
        $region15: #{tpu_custom_call.1} parent=11 // pred_region
          %s161 = smul.u32 2, %s32
          %s163 = ssub.s32 2048, 2048
          %164 = vsyncadd [#allocation5], %s163
          %s165 = smul.addr %s161, 128
          %s166 = scalar_lea.hbm %s1, %s165
          %s167 = sshll.u32 [#allocation4], 4
          %s168 = int_to_ptr.vmem [resolvable:$true] %s167
          %173 = dma.hbm_to_vmem [thread:$0]  %s166, 2048, %s168, [#allocation5], 128, 128, 8
        $region16: #{tpu_custom_call.1} parent=11 // pred_fallthru
          _
        // Predicated region
        $region17: #{tpu_custom_call.1} parent=11 // pred_check
          %p174 = pneg %p87
        $region18: #{tpu_custom_call.1} parent=11 // pred_check_branch
          %176 = sbr.rel (%p174) target = $region20
        $region19: #{tpu_custom_call.1} parent=11 // pred_region
          %s177 = smul.u32 2, %s32
          %s179 = ssub.s32 2048, 2048
          %180 = vsyncadd [#allocation8], %s179
          %s181 = smul.addr %s177, 128
          %s182 = scalar_lea.hbm %s2, %s181
          %s183 = sshll.u32 [#allocation7], 4
          %s184 = int_to_ptr.vmem [resolvable:$true] %s183
          %189 = dma.hbm_to_vmem [thread:$0]  %s182, 2048, %s184, [#allocation8], 128, 128, 8
        $region20: #{tpu_custom_call.1} parent=11 // pred_fallthru
          _
      $region12: #{tpu_custom_call.1} parent=5 // pred_fallthru
        _
      %p190 = scmp.lt.s32.totalorder %s23, 2
      // Predicated region
      $region21: #{tpu_custom_call.1} parent=5 // pred_check
        %p191 = pneg %p190
      $region22: #{tpu_custom_call.1} parent=5 // pred_check_branch
        %193 = sbr.rel (%p191) target = $region24
      $region23: #{tpu_custom_call.1} parent=5 // pred_region
        _
      $region24: #{tpu_custom_call.1} parent=5 // pred_fallthru
        _
      %p194 = scmp.le.s32.totalorder 1, %s23
      %p195 = scmp.lt.s32.totalorder %s23, 3
      %p196 = pnand %p194, %p195
      %p197 = pneg %p196
      // Predicated region
      $region25: #{tpu_custom_call.1} parent=5 // pred_check
        _
      $region26: #{tpu_custom_call.1} parent=5 // pred_check_branch
        %199 = sbr.rel (%p196) target = $region28
      $region27: #{tpu_custom_call.1} parent=5 // pred_region
        %s200 = ssub.s32 %s23, 1
        // Predicated region
        $region29: #{tpu_custom_call.1} parent=27 // pred_check
          %p201 = pneg %p61
        $region30: #{tpu_custom_call.1} parent=27 // pred_check_branch
          %203 = sbr.rel (%p201) target = $region32
        $region31: #{tpu_custom_call.1} parent=27 // pred_region
          %204 = dma.done [#allocation5], 2048
        $region32: #{tpu_custom_call.1} parent=27 // pred_fallthru
          _
        // Predicated region
        $region33: #{tpu_custom_call.1} parent=27 // pred_check
          %p205 = pneg %p87
        $region34: #{tpu_custom_call.1} parent=27 // pred_check_branch
          %207 = sbr.rel (%p205) target = $region36
        $region35: #{tpu_custom_call.1} parent=27 // pred_region
          %208 = dma.done [#allocation8], 2048
        $region36: #{tpu_custom_call.1} parent=27 // pred_fallthru
          _
        %p209 = pneg %p61
        %p210 = pneg %p58
        %p211 = pneg %p87
        %p212 = pneg %p84
        %p213 = pneg %p115
        %p214 = pneg %p112
        %s215 = sand.u32 %s102, 1
        %s216 = scalar_lea.sflag [#allocation6], %s215
        %s217 = sand.u32 %s102, 1
        %s218 = smul.addr %s217, 1024
        %s219 = scalar_lea.vmem [#allocation9], %s218
        %p220 = pneg %p143
        %p221 = pneg %p140
        %s222 = sand.u32 %s130, 1
        %s223 = scalar_lea.sflag [#allocation11], %s222
        %s224 = sand.u32 %s130, 1
        %s225 = smul.addr %s224, 1024
        %s226 = scalar_lea.vmem [#allocation10], %s225
        %s227 = smul.u32 2, %s32
        %s228 = smul.u32 2, %s32
        %s229 = smul.u32 4, %s33
        %s230 = smul.u32 2, %s32
        %s231 = smul.u32 4, %s33
        %s232 = smul.u32 2, %s32
        %v233 = vld [vmem:[#allocation4] sm:$0xff]
        %v234 = vld [vmem:[#allocation4 + $0x8] sm:$0xff]
        %v235 = vld [vmem:[#allocation4 + $0x10] sm:$0xff]
        %v236 = vld [vmem:[#allocation4 + $0x18] sm:$0xff]
        %v237 = vld [vmem:[#allocation4 + $0x20] sm:$0xff]
        %v238 = vld [vmem:[#allocation4 + $0x28] sm:$0xff]
        %v239 = vld [vmem:[#allocation4 + $0x30] sm:$0xff]
        %v240 = vld [vmem:[#allocation4 + $0x38] sm:$0xff]
        %v241 = vld [vmem:[#allocation4 + $0x40] sm:$0xff]
        %v242 = vld [vmem:[#allocation4 + $0x48] sm:$0xff]
        %v243 = vld [vmem:[#allocation4 + $0x50] sm:$0xff]
        %v244 = vld [vmem:[#allocation4 + $0x58] sm:$0xff]
        %v245 = vld [vmem:[#allocation4 + $0x60] sm:$0xff]
        %v246 = vld [vmem:[#allocation4 + $0x68] sm:$0xff]
        %v247 = vld [vmem:[#allocation4 + $0x70] sm:$0xff]
        %v248 = vld [vmem:[#allocation4 + $0x78] sm:$0xff]
        %v249 = vld [vmem:[#allocation7] sm:$0xff]
        %v250 = vld [vmem:[#allocation7 + $0x8] sm:$0xff]
        %v251 = vld [vmem:[#allocation7 + $0x10] sm:$0xff]
        %v252 = vld [vmem:[#allocation7 + $0x18] sm:$0xff]
        %v253 = vld [vmem:[#allocation7 + $0x20] sm:$0xff]
        %v254 = vld [vmem:[#allocation7 + $0x28] sm:$0xff]
        %v255 = vld [vmem:[#allocation7 + $0x30] sm:$0xff]
        %v256 = vld [vmem:[#allocation7 + $0x38] sm:$0xff]
        %v257 = vld [vmem:[#allocation7 + $0x40] sm:$0xff]
        %v258 = vld [vmem:[#allocation7 + $0x48] sm:$0xff]
        %v259 = vld [vmem:[#allocation7 + $0x50] sm:$0xff]
        %v260 = vld [vmem:[#allocation7 + $0x58] sm:$0xff]
        %v261 = vld [vmem:[#allocation7 + $0x60] sm:$0xff]
        %v262 = vld [vmem:[#allocation7 + $0x68] sm:$0xff]
        %v263 = vld [vmem:[#allocation7 + $0x70] sm:$0xff]
        %v264 = vld [vmem:[#allocation7 + $0x78] sm:$0xff]
        %v265 = vlaneseq
        %v266 = vand.u32 %v265, 127
        %s267 = smul.u32 %s33, 4
        %s268 = sld [smem:[#allocation3 + %s267]]
        %s269 = sand.u32 %s268, 127
        %s270 = sand.u32 %s269, 127
        %271 = vrot.lane.b32.xlu0 %v249, %s270
        %v272 = vpop.permute.xlu0 %271
        %273 = vrot.lane.b32.xlu0 %v250, %s270
        %v274 = vpop.permute.xlu0 %273
        %275 = vrot.lane.b32.xlu0 %v251, %s270
        %v276 = vpop.permute.xlu0 %275
        %277 = vrot.lane.b32.xlu0 %v252, %s270
        %v278 = vpop.permute.xlu0 %277
        %279 = vrot.lane.b32.xlu0 %v253, %s270
        %v280 = vpop.permute.xlu0 %279
        %281 = vrot.lane.b32.xlu0 %v254, %s270
        %v282 = vpop.permute.xlu0 %281
        %283 = vrot.lane.b32.xlu0 %v255, %s270
        %v284 = vpop.permute.xlu0 %283
        %285 = vrot.lane.b32.xlu0 %v256, %s270
        %v286 = vpop.permute.xlu0 %285
        %287 = vrot.lane.b32.xlu0 %v257, %s270
        %v288 = vpop.permute.xlu0 %287
        %289 = vrot.lane.b32.xlu0 %v258, %s270
        %v290 = vpop.permute.xlu0 %289
        %291 = vrot.lane.b32.xlu0 %v259, %s270
        %v292 = vpop.permute.xlu0 %291
        %293 = vrot.lane.b32.xlu0 %v260, %s270
        %v294 = vpop.permute.xlu0 %293
        %295 = vrot.lane.b32.xlu0 %v261, %s270
        %v296 = vpop.permute.xlu0 %295
        %297 = vrot.lane.b32.xlu0 %v262, %s270
        %v298 = vpop.permute.xlu0 %297
        %299 = vrot.lane.b32.xlu0 %v263, %s270
        %v300 = vpop.permute.xlu0 %299
        %301 = vrot.lane.b32.xlu0 %v264, %s270
        %v302 = vpop.permute.xlu0 %301
        %v303 = vstv %s268
        %vm304 = vcmp.ge.s32.totalorder %v266, %v303
        %v305 = vsel %vm304, 1, 0
        %vm306 = vcmp.eq.s32.totalorder %v305, 1
        %v307 = vsel %vm306, %v233, 0.0
        %v308 = vsel %vm306, %v234, 0.0
        %v309 = vsel %vm306, %v235, 0.0
        %v310 = vsel %vm306, %v236, 0.0
        %v311 = vsel %vm306, %v237, 0.0
        %v312 = vsel %vm306, %v238, 0.0
        %v313 = vsel %vm306, %v239, 0.0
        %v314 = vsel %vm306, %v240, 0.0
        %v315 = vsel %vm306, %v241, 0.0
        %v316 = vsel %vm306, %v242, 0.0
        %v317 = vsel %vm306, %v243, 0.0
        %v318 = vsel %vm306, %v244, 0.0
        %v319 = vsel %vm306, %v245, 0.0
        %v320 = vsel %vm306, %v246, 0.0
        %v321 = vsel %vm306, %v247, 0.0
        %v322 = vsel %vm306, %v248, 0.0
        %323 = vst [vmem:[%s219] sm:$0xff] %v307
        %324 = vst [vmem:[%s219 + $0x8] sm:$0xff] %v308
        %325 = vst [vmem:[%s219 + $0x40] sm:$0xff] %v309
        %326 = vst [vmem:[%s219 + $0x48] sm:$0xff] %v310
        %327 = vst [vmem:[%s219 + $0x80] sm:$0xff] %v311
        %328 = vst [vmem:[%s219 + $0x88] sm:$0xff] %v312
        %329 = vst [vmem:[%s219 + $0xc0] sm:$0xff] %v313
        %330 = vst [vmem:[%s219 + $0xc8] sm:$0xff] %v314
        %331 = vst [vmem:[%s219 + $0x200] sm:$0xff] %v315
        %332 = vst [vmem:[%s219 + $0x208] sm:$0xff] %v316
        %333 = vst [vmem:[%s219 + $0x240] sm:$0xff] %v317
        %334 = vst [vmem:[%s219 + $0x248] sm:$0xff] %v318
        %335 = vst [vmem:[%s219 + $0x280] sm:$0xff] %v319
        %336 = vst [vmem:[%s219 + $0x288] sm:$0xff] %v320
        %337 = vst [vmem:[%s219 + $0x2c0] sm:$0xff] %v321
        %338 = vst [vmem:[%s219 + $0x2c8] sm:$0xff] %v322
        %v339 = vsel %vm306, %v272, 0.0
        %v340 = vsel %vm306, %v274, 0.0
        %v341 = vsel %vm306, %v276, 0.0
        %v342 = vsel %vm306, %v278, 0.0
        %v343 = vsel %vm306, %v280, 0.0
        %v344 = vsel %vm306, %v282, 0.0
        %v345 = vsel %vm306, %v284, 0.0
        %v346 = vsel %vm306, %v286, 0.0
        %v347 = vsel %vm306, %v288, 0.0
        %v348 = vsel %vm306, %v290, 0.0
        %v349 = vsel %vm306, %v292, 0.0
        %v350 = vsel %vm306, %v294, 0.0
        %v351 = vsel %vm306, %v296, 0.0
        %v352 = vsel %vm306, %v298, 0.0
        %v353 = vsel %vm306, %v300, 0.0
        %v354 = vsel %vm306, %v302, 0.0
        %s355 = scalar_lea.vmem %s219, 256 [#allocation9]
        %356 = vst [vmem:[%s355] sm:$0xff] %v339
        %357 = vst [vmem:[%s355 + $0x8] sm:$0xff] %v340
        %358 = vst [vmem:[%s355 + $0x40] sm:$0xff] %v341
        %359 = vst [vmem:[%s355 + $0x48] sm:$0xff] %v342
        %360 = vst [vmem:[%s355 + $0x80] sm:$0xff] %v343
        %361 = vst [vmem:[%s355 + $0x88] sm:$0xff] %v344
        %362 = vst [vmem:[%s355 + $0xc0] sm:$0xff] %v345
        %363 = vst [vmem:[%s355 + $0xc8] sm:$0xff] %v346
        %364 = vst [vmem:[%s355 + $0x200] sm:$0xff] %v347
        %365 = vst [vmem:[%s355 + $0x208] sm:$0xff] %v348
        %366 = vst [vmem:[%s355 + $0x240] sm:$0xff] %v349
        %367 = vst [vmem:[%s355 + $0x248] sm:$0xff] %v350
        %368 = vst [vmem:[%s355 + $0x280] sm:$0xff] %v351
        %369 = vst [vmem:[%s355 + $0x288] sm:$0xff] %v352
        %370 = vst [vmem:[%s355 + $0x2c0] sm:$0xff] %v353
        %371 = vst [vmem:[%s355 + $0x2c8] sm:$0xff] %v354
        %s372 = ssub.s32 128, %s268
        %p373 = scmp.lt.s32.totalorder %s372, 0
        %s374 = ssub.s32 0, %s372
        %s375 = scalar_select %p373, %s374, %s372
        %s376 = sand.u32 %s375, 127
        %s377 = ssub.s32 0, %s376
        %s378 = scalar_select %p373, %s377, %s376
        %p379 = scmp.ne.s32.totalorder %s378, 0
        %p380 = scmp.lt.s32.totalorder %s378, 0
        %p381 = pnand %p380, %p379
        %p382 = pneg %p381
        %s383 = sadd.s32 %s378, 128
        %s384 = scalar_select %p382, %s383, %s378
        %s385 = sand.u32 %s384, 127
        %s386 = sand.u32 %s385, 127
        %387 = vrot.lane.b32.xlu0 %v233, %s386
        %v388 = vpop.permute.xlu0 %387
        %389 = vrot.lane.b32.xlu0 %v234, %s386
        %v390 = vpop.permute.xlu0 %389
        %391 = vrot.lane.b32.xlu0 %v235, %s386
        %v392 = vpop.permute.xlu0 %391
        %393 = vrot.lane.b32.xlu0 %v236, %s386
        %v394 = vpop.permute.xlu0 %393
        %395 = vrot.lane.b32.xlu0 %v237, %s386
        %v396 = vpop.permute.xlu0 %395
        %397 = vrot.lane.b32.xlu0 %v238, %s386
        %v398 = vpop.permute.xlu0 %397
        %399 = vrot.lane.b32.xlu0 %v239, %s386
        %v400 = vpop.permute.xlu0 %399
        %401 = vrot.lane.b32.xlu0 %v240, %s386
        %v402 = vpop.permute.xlu0 %401
        %403 = vrot.lane.b32.xlu0 %v241, %s386
        %v404 = vpop.permute.xlu0 %403
        %405 = vrot.lane.b32.xlu0 %v242, %s386
        %v406 = vpop.permute.xlu0 %405
        %407 = vrot.lane.b32.xlu0 %v243, %s386
        %v408 = vpop.permute.xlu0 %407
        %409 = vrot.lane.b32.xlu0 %v244, %s386
        %v410 = vpop.permute.xlu0 %409
        %411 = vrot.lane.b32.xlu0 %v245, %s386
        %v412 = vpop.permute.xlu0 %411
        %413 = vrot.lane.b32.xlu0 %v246, %s386
        %v414 = vpop.permute.xlu0 %413
        %415 = vrot.lane.b32.xlu0 %v247, %s386
        %v416 = vpop.permute.xlu0 %415
        %417 = vrot.lane.b32.xlu0 %v248, %s386
        %v418 = vpop.permute.xlu0 %417
        %v419 = vstv %s372
        %vm420 = vcmp.lt.s32.totalorder %v266, %v419
        %v421 = vsel %vm420, 1, 0
        %vm422 = vcmp.eq.s32.totalorder %v421, 1
        %v423 = vsel %vm422, %v388, 0.0
        %v424 = vsel %vm422, %v390, 0.0
        %v425 = vsel %vm422, %v392, 0.0
        %v426 = vsel %vm422, %v394, 0.0
        %v427 = vsel %vm422, %v396, 0.0
        %v428 = vsel %vm422, %v398, 0.0
        %v429 = vsel %vm422, %v400, 0.0
        %v430 = vsel %vm422, %v402, 0.0
        %v431 = vsel %vm422, %v404, 0.0
        %v432 = vsel %vm422, %v406, 0.0
        %v433 = vsel %vm422, %v408, 0.0
        %v434 = vsel %vm422, %v410, 0.0
        %v435 = vsel %vm422, %v412, 0.0
        %v436 = vsel %vm422, %v414, 0.0
        %v437 = vsel %vm422, %v416, 0.0
        %v438 = vsel %vm422, %v418, 0.0
        %439 = vst [vmem:[%s226] sm:$0xff] %v423
        %440 = vst [vmem:[%s226 + $0x8] sm:$0xff] %v424
        %441 = vst [vmem:[%s226 + $0x40] sm:$0xff] %v425
        %442 = vst [vmem:[%s226 + $0x48] sm:$0xff] %v426
        %443 = vst [vmem:[%s226 + $0x80] sm:$0xff] %v427
        %444 = vst [vmem:[%s226 + $0x88] sm:$0xff] %v428
        %445 = vst [vmem:[%s226 + $0xc0] sm:$0xff] %v429
        %446 = vst [vmem:[%s226 + $0xc8] sm:$0xff] %v430
        %447 = vst [vmem:[%s226 + $0x200] sm:$0xff] %v431
        %448 = vst [vmem:[%s226 + $0x208] sm:$0xff] %v432
        %449 = vst [vmem:[%s226 + $0x240] sm:$0xff] %v433
        %450 = vst [vmem:[%s226 + $0x248] sm:$0xff] %v434
        %451 = vst [vmem:[%s226 + $0x280] sm:$0xff] %v435
        %452 = vst [vmem:[%s226 + $0x288] sm:$0xff] %v436
        %453 = vst [vmem:[%s226 + $0x2c0] sm:$0xff] %v437
        %454 = vst [vmem:[%s226 + $0x2c8] sm:$0xff] %v438
        %v455 = vsel %vm422, %v249, 0.0
        %v456 = vsel %vm422, %v250, 0.0
        %v457 = vsel %vm422, %v251, 0.0
        %v458 = vsel %vm422, %v252, 0.0
        %v459 = vsel %vm422, %v253, 0.0
        %v460 = vsel %vm422, %v254, 0.0
        %v461 = vsel %vm422, %v255, 0.0
        %v462 = vsel %vm422, %v256, 0.0
        %v463 = vsel %vm422, %v257, 0.0
        %v464 = vsel %vm422, %v258, 0.0
        %v465 = vsel %vm422, %v259, 0.0
        %v466 = vsel %vm422, %v260, 0.0
        %v467 = vsel %vm422, %v261, 0.0
        %v468 = vsel %vm422, %v262, 0.0
        %v469 = vsel %vm422, %v263, 0.0
        %v470 = vsel %vm422, %v264, 0.0
        %s471 = scalar_lea.vmem %s226, 256 [#allocation10]
        %472 = vst [vmem:[%s471] sm:$0xff] %v455
        %473 = vst [vmem:[%s471 + $0x8] sm:$0xff] %v456
        %474 = vst [vmem:[%s471 + $0x40] sm:$0xff] %v457
        %475 = vst [vmem:[%s471 + $0x48] sm:$0xff] %v458
        %476 = vst [vmem:[%s471 + $0x80] sm:$0xff] %v459
        %477 = vst [vmem:[%s471 + $0x88] sm:$0xff] %v460
        %478 = vst [vmem:[%s471 + $0xc0] sm:$0xff] %v461
        %479 = vst [vmem:[%s471 + $0xc8] sm:$0xff] %v462
        %480 = vst [vmem:[%s471 + $0x200] sm:$0xff] %v463
        %481 = vst [vmem:[%s471 + $0x208] sm:$0xff] %v464
        %482 = vst [vmem:[%s471 + $0x240] sm:$0xff] %v465
        %483 = vst [vmem:[%s471 + $0x248] sm:$0xff] %v466
        %484 = vst [vmem:[%s471 + $0x280] sm:$0xff] %v467
        %485 = vst [vmem:[%s471 + $0x288] sm:$0xff] %v468
        %486 = vst [vmem:[%s471 + $0x2c0] sm:$0xff] %v469
        %487 = vst [vmem:[%s471 + $0x2c8] sm:$0xff] %v470
        %s488 = sadd.s32 %s267, 1
        %s489 = sld [smem:[#allocation3 + %s488]]
        %s490 = sand.u32 %s489, 127
        %s491 = sand.u32 %s490, 127
        %492 = vrot.lane.b32.xlu0 %v249, %s491
        %v493 = vpop.permute.xlu0 %492
        %494 = vrot.lane.b32.xlu0 %v250, %s491
        %v495 = vpop.permute.xlu0 %494
        %496 = vrot.lane.b32.xlu0 %v251, %s491
        %v497 = vpop.permute.xlu0 %496
        %498 = vrot.lane.b32.xlu0 %v252, %s491
        %v499 = vpop.permute.xlu0 %498
        %500 = vrot.lane.b32.xlu0 %v253, %s491
        %v501 = vpop.permute.xlu0 %500
        %502 = vrot.lane.b32.xlu0 %v254, %s491
        %v503 = vpop.permute.xlu0 %502
        %504 = vrot.lane.b32.xlu0 %v255, %s491
        %v505 = vpop.permute.xlu0 %504
        %506 = vrot.lane.b32.xlu0 %v256, %s491
        %v507 = vpop.permute.xlu0 %506
        %508 = vrot.lane.b32.xlu0 %v257, %s491
        %v509 = vpop.permute.xlu0 %508
        %510 = vrot.lane.b32.xlu0 %v258, %s491
        %v511 = vpop.permute.xlu0 %510
        %512 = vrot.lane.b32.xlu0 %v259, %s491
        %v513 = vpop.permute.xlu0 %512
        %514 = vrot.lane.b32.xlu0 %v260, %s491
        %v515 = vpop.permute.xlu0 %514
        %516 = vrot.lane.b32.xlu0 %v261, %s491
        %v517 = vpop.permute.xlu0 %516
        %518 = vrot.lane.b32.xlu0 %v262, %s491
        %v519 = vpop.permute.xlu0 %518
        %520 = vrot.lane.b32.xlu0 %v263, %s491
        %v521 = vpop.permute.xlu0 %520
        %522 = vrot.lane.b32.xlu0 %v264, %s491
        %v523 = vpop.permute.xlu0 %522
        %v524 = vstv %s489
        %vm525 = vcmp.ge.s32.totalorder %v266, %v524
        %v526 = vsel %vm525, 1, 0
        %vm527 = vcmp.eq.s32.totalorder %v526, 1
        %v528 = vsel %vm527, %v233, 0.0
        %v529 = vsel %vm527, %v234, 0.0
        %v530 = vsel %vm527, %v235, 0.0
        %v531 = vsel %vm527, %v236, 0.0
        %v532 = vsel %vm527, %v237, 0.0
        %v533 = vsel %vm527, %v238, 0.0
        %v534 = vsel %vm527, %v239, 0.0
        %v535 = vsel %vm527, %v240, 0.0
        %v536 = vsel %vm527, %v241, 0.0
        %v537 = vsel %vm527, %v242, 0.0
        %v538 = vsel %vm527, %v243, 0.0
        %v539 = vsel %vm527, %v244, 0.0
        %v540 = vsel %vm527, %v245, 0.0
        %v541 = vsel %vm527, %v246, 0.0
        %v542 = vsel %vm527, %v247, 0.0
        %v543 = vsel %vm527, %v248, 0.0
        %s544 = scalar_lea.vmem %s219, 16 [#allocation9]
        %545 = vst [vmem:[%s544] sm:$0xff] %v528
        %546 = vst [vmem:[%s544 + $0x8] sm:$0xff] %v529
        %547 = vst [vmem:[%s544 + $0x40] sm:$0xff] %v530
        %548 = vst [vmem:[%s544 + $0x48] sm:$0xff] %v531
        %549 = vst [vmem:[%s544 + $0x80] sm:$0xff] %v532
        %550 = vst [vmem:[%s544 + $0x88] sm:$0xff] %v533
        %551 = vst [vmem:[%s544 + $0xc0] sm:$0xff] %v534
        %552 = vst [vmem:[%s544 + $0xc8] sm:$0xff] %v535
        %553 = vst [vmem:[%s544 + $0x200] sm:$0xff] %v536
        %554 = vst [vmem:[%s544 + $0x208] sm:$0xff] %v537
        %555 = vst [vmem:[%s544 + $0x240] sm:$0xff] %v538
        %556 = vst [vmem:[%s544 + $0x248] sm:$0xff] %v539
        %557 = vst [vmem:[%s544 + $0x280] sm:$0xff] %v540
        %558 = vst [vmem:[%s544 + $0x288] sm:$0xff] %v541
        %559 = vst [vmem:[%s544 + $0x2c0] sm:$0xff] %v542
        %560 = vst [vmem:[%s544 + $0x2c8] sm:$0xff] %v543
        %v561 = vsel %vm527, %v493, 0.0
        %v562 = vsel %vm527, %v495, 0.0
        %v563 = vsel %vm527, %v497, 0.0
        %v564 = vsel %vm527, %v499, 0.0
        %v565 = vsel %vm527, %v501, 0.0
        %v566 = vsel %vm527, %v503, 0.0
        %v567 = vsel %vm527, %v505, 0.0
        %v568 = vsel %vm527, %v507, 0.0
        %v569 = vsel %vm527, %v509, 0.0
        %v570 = vsel %vm527, %v511, 0.0
        %v571 = vsel %vm527, %v513, 0.0
        %v572 = vsel %vm527, %v515, 0.0
        %v573 = vsel %vm527, %v517, 0.0
        %v574 = vsel %vm527, %v519, 0.0
        %v575 = vsel %vm527, %v521, 0.0
        %v576 = vsel %vm527, %v523, 0.0
        %s577 = scalar_lea.vmem %s219, 272 [#allocation9]
        %578 = vst [vmem:[%s577] sm:$0xff] %v561
        %579 = vst [vmem:[%s577 + $0x8] sm:$0xff] %v562
        %580 = vst [vmem:[%s577 + $0x40] sm:$0xff] %v563
        %581 = vst [vmem:[%s577 + $0x48] sm:$0xff] %v564
        %582 = vst [vmem:[%s577 + $0x80] sm:$0xff] %v565
        %583 = vst [vmem:[%s577 + $0x88] sm:$0xff] %v566
        %584 = vst [vmem:[%s577 + $0xc0] sm:$0xff] %v567
        %585 = vst [vmem:[%s577 + $0xc8] sm:$0xff] %v568
        %586 = vst [vmem:[%s577 + $0x200] sm:$0xff] %v569
        %587 = vst [vmem:[%s577 + $0x208] sm:$0xff] %v570
        %588 = vst [vmem:[%s577 + $0x240] sm:$0xff] %v571
        %589 = vst [vmem:[%s577 + $0x248] sm:$0xff] %v572
        %590 = vst [vmem:[%s577 + $0x280] sm:$0xff] %v573
        %591 = vst [vmem:[%s577 + $0x288] sm:$0xff] %v574
        %592 = vst [vmem:[%s577 + $0x2c0] sm:$0xff] %v575
        %593 = vst [vmem:[%s577 + $0x2c8] sm:$0xff] %v576
        %s594 = ssub.s32 128, %s489
        %p595 = scmp.lt.s32.totalorder %s594, 0
        %s596 = ssub.s32 0, %s594
        %s597 = scalar_select %p595, %s596, %s594
        %s598 = sand.u32 %s597, 127
        %s599 = ssub.s32 0, %s598
        %s600 = scalar_select %p595, %s599, %s598
        %p601 = scmp.ne.s32.totalorder %s600, 0
        %p602 = scmp.lt.s32.totalorder %s600, 0
        %p603 = pnand %p602, %p601
        %p604 = pneg %p603
        %s605 = sadd.s32 %s600, 128
        %s606 = scalar_select %p604, %s605, %s600
        %s607 = sand.u32 %s606, 127
        %s608 = sand.u32 %s607, 127
        %609 = vrot.lane.b32.xlu0 %v233, %s608
        %v610 = vpop.permute.xlu0 %609
        %611 = vrot.lane.b32.xlu0 %v234, %s608
        %v612 = vpop.permute.xlu0 %611
        %613 = vrot.lane.b32.xlu0 %v235, %s608
        %v614 = vpop.permute.xlu0 %613
        %615 = vrot.lane.b32.xlu0 %v236, %s608
        %v616 = vpop.permute.xlu0 %615
        %617 = vrot.lane.b32.xlu0 %v237, %s608
        %v618 = vpop.permute.xlu0 %617
        %619 = vrot.lane.b32.xlu0 %v238, %s608
        %v620 = vpop.permute.xlu0 %619
        %621 = vrot.lane.b32.xlu0 %v239, %s608
        %v622 = vpop.permute.xlu0 %621
        %623 = vrot.lane.b32.xlu0 %v240, %s608
        %v624 = vpop.permute.xlu0 %623
        %625 = vrot.lane.b32.xlu0 %v241, %s608
        %v626 = vpop.permute.xlu0 %625
        %627 = vrot.lane.b32.xlu0 %v242, %s608
        %v628 = vpop.permute.xlu0 %627
        %629 = vrot.lane.b32.xlu0 %v243, %s608
        %v630 = vpop.permute.xlu0 %629
        %631 = vrot.lane.b32.xlu0 %v244, %s608
        %v632 = vpop.permute.xlu0 %631
        %633 = vrot.lane.b32.xlu0 %v245, %s608
        %v634 = vpop.permute.xlu0 %633
        %635 = vrot.lane.b32.xlu0 %v246, %s608
        %v636 = vpop.permute.xlu0 %635
        %637 = vrot.lane.b32.xlu0 %v247, %s608
        %v638 = vpop.permute.xlu0 %637
        %639 = vrot.lane.b32.xlu0 %v248, %s608
        %v640 = vpop.permute.xlu0 %639
        %v641 = vstv %s594
        %vm642 = vcmp.lt.s32.totalorder %v266, %v641
        %v643 = vsel %vm642, 1, 0
        %vm644 = vcmp.eq.s32.totalorder %v643, 1
        %v645 = vsel %vm644, %v610, 0.0
        %v646 = vsel %vm644, %v612, 0.0
        %v647 = vsel %vm644, %v614, 0.0
        %v648 = vsel %vm644, %v616, 0.0
        %v649 = vsel %vm644, %v618, 0.0
        %v650 = vsel %vm644, %v620, 0.0
        %v651 = vsel %vm644, %v622, 0.0
        %v652 = vsel %vm644, %v624, 0.0
        %v653 = vsel %vm644, %v626, 0.0
        %v654 = vsel %vm644, %v628, 0.0
        %v655 = vsel %vm644, %v630, 0.0
        %v656 = vsel %vm644, %v632, 0.0
        %v657 = vsel %vm644, %v634, 0.0
        %v658 = vsel %vm644, %v636, 0.0
        %v659 = vsel %vm644, %v638, 0.0
        %v660 = vsel %vm644, %v640, 0.0
        %s661 = scalar_lea.vmem %s226, 16 [#allocation10]
        %662 = vst [vmem:[%s661] sm:$0xff] %v645
        %663 = vst [vmem:[%s661 + $0x8] sm:$0xff] %v646
        %664 = vst [vmem:[%s661 + $0x40] sm:$0xff] %v647
        %665 = vst [vmem:[%s661 + $0x48] sm:$0xff] %v648
        %666 = vst [vmem:[%s661 + $0x80] sm:$0xff] %v649
        %667 = vst [vmem:[%s661 + $0x88] sm:$0xff] %v650
        %668 = vst [vmem:[%s661 + $0xc0] sm:$0xff] %v651
        %669 = vst [vmem:[%s661 + $0xc8] sm:$0xff] %v652
        %670 = vst [vmem:[%s661 + $0x200] sm:$0xff] %v653
        %671 = vst [vmem:[%s661 + $0x208] sm:$0xff] %v654
        %672 = vst [vmem:[%s661 + $0x240] sm:$0xff] %v655
        %673 = vst [vmem:[%s661 + $0x248] sm:$0xff] %v656
        %674 = vst [vmem:[%s661 + $0x280] sm:$0xff] %v657
        %675 = vst [vmem:[%s661 + $0x288] sm:$0xff] %v658
        %676 = vst [vmem:[%s661 + $0x2c0] sm:$0xff] %v659
        %677 = vst [vmem:[%s661 + $0x2c8] sm:$0xff] %v660
        %v678 = vsel %vm644, %v249, 0.0
        %v679 = vsel %vm644, %v250, 0.0
        %v680 = vsel %vm644, %v251, 0.0
        %v681 = vsel %vm644, %v252, 0.0
        %v682 = vsel %vm644, %v253, 0.0
        %v683 = vsel %vm644, %v254, 0.0
        %v684 = vsel %vm644, %v255, 0.0
        %v685 = vsel %vm644, %v256, 0.0
        %v686 = vsel %vm644, %v257, 0.0
        %v687 = vsel %vm644, %v258, 0.0
        %v688 = vsel %vm644, %v259, 0.0
        %v689 = vsel %vm644, %v260, 0.0
        %v690 = vsel %vm644, %v261, 0.0
        %v691 = vsel %vm644, %v262, 0.0
        %v692 = vsel %vm644, %v263, 0.0
        %v693 = vsel %vm644, %v264, 0.0
        %s694 = scalar_lea.vmem %s226, 272 [#allocation10]
        %695 = vst [vmem:[%s694] sm:$0xff] %v678
        %696 = vst [vmem:[%s694 + $0x8] sm:$0xff] %v679
        %697 = vst [vmem:[%s694 + $0x40] sm:$0xff] %v680
        %698 = vst [vmem:[%s694 + $0x48] sm:$0xff] %v681
        %699 = vst [vmem:[%s694 + $0x80] sm:$0xff] %v682
        %700 = vst [vmem:[%s694 + $0x88] sm:$0xff] %v683
        %701 = vst [vmem:[%s694 + $0xc0] sm:$0xff] %v684
        %702 = vst [vmem:[%s694 + $0xc8] sm:$0xff] %v685
        %703 = vst [vmem:[%s694 + $0x200] sm:$0xff] %v686
        %704 = vst [vmem:[%s694 + $0x208] sm:$0xff] %v687
        %705 = vst [vmem:[%s694 + $0x240] sm:$0xff] %v688
        %706 = vst [vmem:[%s694 + $0x248] sm:$0xff] %v689
        %707 = vst [vmem:[%s694 + $0x280] sm:$0xff] %v690
        %708 = vst [vmem:[%s694 + $0x288] sm:$0xff] %v691
        %709 = vst [vmem:[%s694 + $0x2c0] sm:$0xff] %v692
        %710 = vst [vmem:[%s694 + $0x2c8] sm:$0xff] %v693
        %s711 = sadd.s32 %s267, 2
        %s712 = sld [smem:[#allocation3 + %s711]]
        %s713 = sand.u32 %s712, 127
        %s714 = sand.u32 %s713, 127
        %715 = vrot.lane.b32.xlu0 %v249, %s714
        %v716 = vpop.permute.xlu0 %715
        %717 = vrot.lane.b32.xlu0 %v250, %s714
        %v718 = vpop.permute.xlu0 %717
        %719 = vrot.lane.b32.xlu0 %v251, %s714
        %v720 = vpop.permute.xlu0 %719
        %721 = vrot.lane.b32.xlu0 %v252, %s714
        %v722 = vpop.permute.xlu0 %721
        %723 = vrot.lane.b32.xlu0 %v253, %s714
        %v724 = vpop.permute.xlu0 %723
        %725 = vrot.lane.b32.xlu0 %v254, %s714
        %v726 = vpop.permute.xlu0 %725
        %727 = vrot.lane.b32.xlu0 %v255, %s714
        %v728 = vpop.permute.xlu0 %727
        %729 = vrot.lane.b32.xlu0 %v256, %s714
        %v730 = vpop.permute.xlu0 %729
        %731 = vrot.lane.b32.xlu0 %v257, %s714
        %v732 = vpop.permute.xlu0 %731
        %733 = vrot.lane.b32.xlu0 %v258, %s714
        %v734 = vpop.permute.xlu0 %733
        %735 = vrot.lane.b32.xlu0 %v259, %s714
        %v736 = vpop.permute.xlu0 %735
        %737 = vrot.lane.b32.xlu0 %v260, %s714
        %v738 = vpop.permute.xlu0 %737
        %739 = vrot.lane.b32.xlu0 %v261, %s714
        %v740 = vpop.permute.xlu0 %739
        %741 = vrot.lane.b32.xlu0 %v262, %s714
        %v742 = vpop.permute.xlu0 %741
        %743 = vrot.lane.b32.xlu0 %v263, %s714
        %v744 = vpop.permute.xlu0 %743
        %745 = vrot.lane.b32.xlu0 %v264, %s714
        %v746 = vpop.permute.xlu0 %745
        %v747 = vstv %s712
        %vm748 = vcmp.ge.s32.totalorder %v266, %v747
        %v749 = vsel %vm748, 1, 0
        %vm750 = vcmp.eq.s32.totalorder %v749, 1
        %v751 = vsel %vm750, %v233, 0.0
        %v752 = vsel %vm750, %v234, 0.0
        %v753 = vsel %vm750, %v235, 0.0
        %v754 = vsel %vm750, %v236, 0.0
        %v755 = vsel %vm750, %v237, 0.0
        %v756 = vsel %vm750, %v238, 0.0
        %v757 = vsel %vm750, %v239, 0.0
        %v758 = vsel %vm750, %v240, 0.0
        %v759 = vsel %vm750, %v241, 0.0
        %v760 = vsel %vm750, %v242, 0.0
        %v761 = vsel %vm750, %v243, 0.0
        %v762 = vsel %vm750, %v244, 0.0
        %v763 = vsel %vm750, %v245, 0.0
        %v764 = vsel %vm750, %v246, 0.0
        %v765 = vsel %vm750, %v247, 0.0
        %v766 = vsel %vm750, %v248, 0.0
        %s767 = scalar_lea.vmem %s219, 32 [#allocation9]
        %768 = vst [vmem:[%s767] sm:$0xff] %v751
        %769 = vst [vmem:[%s767 + $0x8] sm:$0xff] %v752
        %770 = vst [vmem:[%s767 + $0x40] sm:$0xff] %v753
        %771 = vst [vmem:[%s767 + $0x48] sm:$0xff] %v754
        %772 = vst [vmem:[%s767 + $0x80] sm:$0xff] %v755
        %773 = vst [vmem:[%s767 + $0x88] sm:$0xff] %v756
        %774 = vst [vmem:[%s767 + $0xc0] sm:$0xff] %v757
        %775 = vst [vmem:[%s767 + $0xc8] sm:$0xff] %v758
        %776 = vst [vmem:[%s767 + $0x200] sm:$0xff] %v759
        %777 = vst [vmem:[%s767 + $0x208] sm:$0xff] %v760
        %778 = vst [vmem:[%s767 + $0x240] sm:$0xff] %v761
        %779 = vst [vmem:[%s767 + $0x248] sm:$0xff] %v762
        %780 = vst [vmem:[%s767 + $0x280] sm:$0xff] %v763
        %781 = vst [vmem:[%s767 + $0x288] sm:$0xff] %v764
        %782 = vst [vmem:[%s767 + $0x2c0] sm:$0xff] %v765
        %783 = vst [vmem:[%s767 + $0x2c8] sm:$0xff] %v766
        %v784 = vsel %vm750, %v716, 0.0
        %v785 = vsel %vm750, %v718, 0.0
        %v786 = vsel %vm750, %v720, 0.0
        %v787 = vsel %vm750, %v722, 0.0
        %v788 = vsel %vm750, %v724, 0.0
        %v789 = vsel %vm750, %v726, 0.0
        %v790 = vsel %vm750, %v728, 0.0
        %v791 = vsel %vm750, %v730, 0.0
        %v792 = vsel %vm750, %v732, 0.0
        %v793 = vsel %vm750, %v734, 0.0
        %v794 = vsel %vm750, %v736, 0.0
        %v795 = vsel %vm750, %v738, 0.0
        %v796 = vsel %vm750, %v740, 0.0
        %v797 = vsel %vm750, %v742, 0.0
        %v798 = vsel %vm750, %v744, 0.0
        %v799 = vsel %vm750, %v746, 0.0
        %s800 = scalar_lea.vmem %s219, 288 [#allocation9]
        %801 = vst [vmem:[%s800] sm:$0xff] %v784
        %802 = vst [vmem:[%s800 + $0x8] sm:$0xff] %v785
        %803 = vst [vmem:[%s800 + $0x40] sm:$0xff] %v786
        %804 = vst [vmem:[%s800 + $0x48] sm:$0xff] %v787
        %805 = vst [vmem:[%s800 + $0x80] sm:$0xff] %v788
        %806 = vst [vmem:[%s800 + $0x88] sm:$0xff] %v789
        %807 = vst [vmem:[%s800 + $0xc0] sm:$0xff] %v790
        %808 = vst [vmem:[%s800 + $0xc8] sm:$0xff] %v791
        %809 = vst [vmem:[%s800 + $0x200] sm:$0xff] %v792
        %810 = vst [vmem:[%s800 + $0x208] sm:$0xff] %v793
        %811 = vst [vmem:[%s800 + $0x240] sm:$0xff] %v794
        %812 = vst [vmem:[%s800 + $0x248] sm:$0xff] %v795
        %813 = vst [vmem:[%s800 + $0x280] sm:$0xff] %v796
        %814 = vst [vmem:[%s800 + $0x288] sm:$0xff] %v797
        %815 = vst [vmem:[%s800 + $0x2c0] sm:$0xff] %v798
        %816 = vst [vmem:[%s800 + $0x2c8] sm:$0xff] %v799
        %s817 = ssub.s32 128, %s712
        %p818 = scmp.lt.s32.totalorder %s817, 0
        %s819 = ssub.s32 0, %s817
        %s820 = scalar_select %p818, %s819, %s817
        %s821 = sand.u32 %s820, 127
        %s822 = ssub.s32 0, %s821
        %s823 = scalar_select %p818, %s822, %s821
        %p824 = scmp.ne.s32.totalorder %s823, 0
        %p825 = scmp.lt.s32.totalorder %s823, 0
        %p826 = pnand %p825, %p824
        %p827 = pneg %p826
        %s828 = sadd.s32 %s823, 128
        %s829 = scalar_select %p827, %s828, %s823
        %s830 = sand.u32 %s829, 127
        %s831 = sand.u32 %s830, 127
        %832 = vrot.lane.b32.xlu0 %v233, %s831
        %v833 = vpop.permute.xlu0 %832
        %834 = vrot.lane.b32.xlu0 %v234, %s831
        %v835 = vpop.permute.xlu0 %834
        %836 = vrot.lane.b32.xlu0 %v235, %s831
        %v837 = vpop.permute.xlu0 %836
        %838 = vrot.lane.b32.xlu0 %v236, %s831
        %v839 = vpop.permute.xlu0 %838
        %840 = vrot.lane.b32.xlu0 %v237, %s831
        %v841 = vpop.permute.xlu0 %840
        %842 = vrot.lane.b32.xlu0 %v238, %s831
        %v843 = vpop.permute.xlu0 %842
        %844 = vrot.lane.b32.xlu0 %v239, %s831
        %v845 = vpop.permute.xlu0 %844
        %846 = vrot.lane.b32.xlu0 %v240, %s831
        %v847 = vpop.permute.xlu0 %846
        %848 = vrot.lane.b32.xlu0 %v241, %s831
        %v849 = vpop.permute.xlu0 %848
        %850 = vrot.lane.b32.xlu0 %v242, %s831
        %v851 = vpop.permute.xlu0 %850
        %852 = vrot.lane.b32.xlu0 %v243, %s831
        %v853 = vpop.permute.xlu0 %852
        %854 = vrot.lane.b32.xlu0 %v244, %s831
        %v855 = vpop.permute.xlu0 %854
        %856 = vrot.lane.b32.xlu0 %v245, %s831
        %v857 = vpop.permute.xlu0 %856
        %858 = vrot.lane.b32.xlu0 %v246, %s831
        %v859 = vpop.permute.xlu0 %858
        %860 = vrot.lane.b32.xlu0 %v247, %s831
        %v861 = vpop.permute.xlu0 %860
        %862 = vrot.lane.b32.xlu0 %v248, %s831
        %v863 = vpop.permute.xlu0 %862
        %v864 = vstv %s817
        %vm865 = vcmp.lt.s32.totalorder %v266, %v864
        %v866 = vsel %vm865, 1, 0
        %vm867 = vcmp.eq.s32.totalorder %v866, 1
        %v868 = vsel %vm867, %v833, 0.0
        %v869 = vsel %vm867, %v835, 0.0
        %v870 = vsel %vm867, %v837, 0.0
        %v871 = vsel %vm867, %v839, 0.0
        %v872 = vsel %vm867, %v841, 0.0
        %v873 = vsel %vm867, %v843, 0.0
        %v874 = vsel %vm867, %v845, 0.0
        %v875 = vsel %vm867, %v847, 0.0
        %v876 = vsel %vm867, %v849, 0.0
        %v877 = vsel %vm867, %v851, 0.0
        %v878 = vsel %vm867, %v853, 0.0
        %v879 = vsel %vm867, %v855, 0.0
        %v880 = vsel %vm867, %v857, 0.0
        %v881 = vsel %vm867, %v859, 0.0
        %v882 = vsel %vm867, %v861, 0.0
        %v883 = vsel %vm867, %v863, 0.0
        %s884 = scalar_lea.vmem %s226, 32 [#allocation10]
        %885 = vst [vmem:[%s884] sm:$0xff] %v868
        %886 = vst [vmem:[%s884 + $0x8] sm:$0xff] %v869
        %887 = vst [vmem:[%s884 + $0x40] sm:$0xff] %v870
        %888 = vst [vmem:[%s884 + $0x48] sm:$0xff] %v871
        %889 = vst [vmem:[%s884 + $0x80] sm:$0xff] %v872
        %890 = vst [vmem:[%s884 + $0x88] sm:$0xff] %v873
        %891 = vst [vmem:[%s884 + $0xc0] sm:$0xff] %v874
        %892 = vst [vmem:[%s884 + $0xc8] sm:$0xff] %v875
        %893 = vst [vmem:[%s884 + $0x200] sm:$0xff] %v876
        %894 = vst [vmem:[%s884 + $0x208] sm:$0xff] %v877
        %895 = vst [vmem:[%s884 + $0x240] sm:$0xff] %v878
        %896 = vst [vmem:[%s884 + $0x248] sm:$0xff] %v879
        %897 = vst [vmem:[%s884 + $0x280] sm:$0xff] %v880
        %898 = vst [vmem:[%s884 + $0x288] sm:$0xff] %v881
        %899 = vst [vmem:[%s884 + $0x2c0] sm:$0xff] %v882
        %900 = vst [vmem:[%s884 + $0x2c8] sm:$0xff] %v883
        %v901 = vsel %vm867, %v249, 0.0
        %v902 = vsel %vm867, %v250, 0.0
        %v903 = vsel %vm867, %v251, 0.0
        %v904 = vsel %vm867, %v252, 0.0
        %v905 = vsel %vm867, %v253, 0.0
        %v906 = vsel %vm867, %v254, 0.0
        %v907 = vsel %vm867, %v255, 0.0
        %v908 = vsel %vm867, %v256, 0.0
        %v909 = vsel %vm867, %v257, 0.0
        %v910 = vsel %vm867, %v258, 0.0
        %v911 = vsel %vm867, %v259, 0.0
        %v912 = vsel %vm867, %v260, 0.0
        %v913 = vsel %vm867, %v261, 0.0
        %v914 = vsel %vm867, %v262, 0.0
        %v915 = vsel %vm867, %v263, 0.0
        %v916 = vsel %vm867, %v264, 0.0
        %s917 = scalar_lea.vmem %s226, 288 [#allocation10]
        %918 = vst [vmem:[%s917] sm:$0xff] %v901
        %919 = vst [vmem:[%s917 + $0x8] sm:$0xff] %v902
        %920 = vst [vmem:[%s917 + $0x40] sm:$0xff] %v903
        %921 = vst [vmem:[%s917 + $0x48] sm:$0xff] %v904
        %922 = vst [vmem:[%s917 + $0x80] sm:$0xff] %v905
        %923 = vst [vmem:[%s917 + $0x88] sm:$0xff] %v906
        %924 = vst [vmem:[%s917 + $0xc0] sm:$0xff] %v907
        %925 = vst [vmem:[%s917 + $0xc8] sm:$0xff] %v908
        %926 = vst [vmem:[%s917 + $0x200] sm:$0xff] %v909
        %927 = vst [vmem:[%s917 + $0x208] sm:$0xff] %v910
        %928 = vst [vmem:[%s917 + $0x240] sm:$0xff] %v911
        %929 = vst [vmem:[%s917 + $0x248] sm:$0xff] %v912
        %930 = vst [vmem:[%s917 + $0x280] sm:$0xff] %v913
        %931 = vst [vmem:[%s917 + $0x288] sm:$0xff] %v914
        %932 = vst [vmem:[%s917 + $0x2c0] sm:$0xff] %v915
        %933 = vst [vmem:[%s917 + $0x2c8] sm:$0xff] %v916
        %s934 = sadd.s32 %s267, 3
        %s935 = sld [smem:[#allocation3 + %s934]]
        %s936 = sand.u32 %s935, 127
        %s937 = sand.u32 %s936, 127
        %938 = vrot.lane.b32.xlu0 %v249, %s937
        %v939 = vpop.permute.xlu0 %938
        %940 = vrot.lane.b32.xlu0 %v250, %s937
        %v941 = vpop.permute.xlu0 %940
        %942 = vrot.lane.b32.xlu0 %v251, %s937
        %v943 = vpop.permute.xlu0 %942
        %944 = vrot.lane.b32.xlu0 %v252, %s937
        %v945 = vpop.permute.xlu0 %944
        %946 = vrot.lane.b32.xlu0 %v253, %s937
        %v947 = vpop.permute.xlu0 %946
        %948 = vrot.lane.b32.xlu0 %v254, %s937
        %v949 = vpop.permute.xlu0 %948
        %950 = vrot.lane.b32.xlu0 %v255, %s937
        %v951 = vpop.permute.xlu0 %950
        %952 = vrot.lane.b32.xlu0 %v256, %s937
        %v953 = vpop.permute.xlu0 %952
        %954 = vrot.lane.b32.xlu0 %v257, %s937
        %v955 = vpop.permute.xlu0 %954
        %956 = vrot.lane.b32.xlu0 %v258, %s937
        %v957 = vpop.permute.xlu0 %956
        %958 = vrot.lane.b32.xlu0 %v259, %s937
        %v959 = vpop.permute.xlu0 %958
        %960 = vrot.lane.b32.xlu0 %v260, %s937
        %v961 = vpop.permute.xlu0 %960
        %962 = vrot.lane.b32.xlu0 %v261, %s937
        %v963 = vpop.permute.xlu0 %962
        %964 = vrot.lane.b32.xlu0 %v262, %s937
        %v965 = vpop.permute.xlu0 %964
        %966 = vrot.lane.b32.xlu0 %v263, %s937
        %v967 = vpop.permute.xlu0 %966
        %968 = vrot.lane.b32.xlu0 %v264, %s937
        %v969 = vpop.permute.xlu0 %968
        %v970 = vstv %s935
        %vm971 = vcmp.ge.s32.totalorder %v266, %v970
        %v972 = vsel %vm971, 1, 0
        %vm973 = vcmp.eq.s32.totalorder %v972, 1
        %v974 = vsel %vm973, %v233, 0.0
        %v975 = vsel %vm973, %v234, 0.0
        %v976 = vsel %vm973, %v235, 0.0
        %v977 = vsel %vm973, %v236, 0.0
        %v978 = vsel %vm973, %v237, 0.0
        %v979 = vsel %vm973, %v238, 0.0
        %v980 = vsel %vm973, %v239, 0.0
        %v981 = vsel %vm973, %v240, 0.0
        %v982 = vsel %vm973, %v241, 0.0
        %v983 = vsel %vm973, %v242, 0.0
        %v984 = vsel %vm973, %v243, 0.0
        %v985 = vsel %vm973, %v244, 0.0
        %v986 = vsel %vm973, %v245, 0.0
        %v987 = vsel %vm973, %v246, 0.0
        %v988 = vsel %vm973, %v247, 0.0
        %v989 = vsel %vm973, %v248, 0.0
        %s990 = scalar_lea.vmem %s219, 48 [#allocation9]
        %991 = vst [vmem:[%s990] sm:$0xff] %v974
        %992 = vst [vmem:[%s990 + $0x8] sm:$0xff] %v975
        %993 = vst [vmem:[%s990 + $0x40] sm:$0xff] %v976
        %994 = vst [vmem:[%s990 + $0x48] sm:$0xff] %v977
        %995 = vst [vmem:[%s990 + $0x80] sm:$0xff] %v978
        %996 = vst [vmem:[%s990 + $0x88] sm:$0xff] %v979
        %997 = vst [vmem:[%s990 + $0xc0] sm:$0xff] %v980
        %998 = vst [vmem:[%s990 + $0xc8] sm:$0xff] %v981
        %999 = vst [vmem:[%s990 + $0x200] sm:$0xff] %v982
        %1000 = vst [vmem:[%s990 + $0x208] sm:$0xff] %v983
        %1001 = vst [vmem:[%s990 + $0x240] sm:$0xff] %v984
        %1002 = vst [vmem:[%s990 + $0x248] sm:$0xff] %v985
        %1003 = vst [vmem:[%s990 + $0x280] sm:$0xff] %v986
        %1004 = vst [vmem:[%s990 + $0x288] sm:$0xff] %v987
        %1005 = vst [vmem:[%s990 + $0x2c0] sm:$0xff] %v988
        %1006 = vst [vmem:[%s990 + $0x2c8] sm:$0xff] %v989
        %v1007 = vsel %vm973, %v939, 0.0
        %v1008 = vsel %vm973, %v941, 0.0
        %v1009 = vsel %vm973, %v943, 0.0
        %v1010 = vsel %vm973, %v945, 0.0
        %v1011 = vsel %vm973, %v947, 0.0
        %v1012 = vsel %vm973, %v949, 0.0
        %v1013 = vsel %vm973, %v951, 0.0
        %v1014 = vsel %vm973, %v953, 0.0
        %v1015 = vsel %vm973, %v955, 0.0
        %v1016 = vsel %vm973, %v957, 0.0
        %v1017 = vsel %vm973, %v959, 0.0
        %v1018 = vsel %vm973, %v961, 0.0
        %v1019 = vsel %vm973, %v963, 0.0
        %v1020 = vsel %vm973, %v965, 0.0
        %v1021 = vsel %vm973, %v967, 0.0
        %v1022 = vsel %vm973, %v969, 0.0
        %s1023 = scalar_lea.vmem %s219, 304 [#allocation9]
        %1024 = vst [vmem:[%s1023] sm:$0xff] %v1007
        %1025 = vst [vmem:[%s1023 + $0x8] sm:$0xff] %v1008
        %1026 = vst [vmem:[%s1023 + $0x40] sm:$0xff] %v1009
        %1027 = vst [vmem:[%s1023 + $0x48] sm:$0xff] %v1010
        %1028 = vst [vmem:[%s1023 + $0x80] sm:$0xff] %v1011
        %1029 = vst [vmem:[%s1023 + $0x88] sm:$0xff] %v1012
        %1030 = vst [vmem:[%s1023 + $0xc0] sm:$0xff] %v1013
        %1031 = vst [vmem:[%s1023 + $0xc8] sm:$0xff] %v1014
        %1032 = vst [vmem:[%s1023 + $0x200] sm:$0xff] %v1015
        %1033 = vst [vmem:[%s1023 + $0x208] sm:$0xff] %v1016
        %1034 = vst [vmem:[%s1023 + $0x240] sm:$0xff] %v1017
        %1035 = vst [vmem:[%s1023 + $0x248] sm:$0xff] %v1018
        %1036 = vst [vmem:[%s1023 + $0x280] sm:$0xff] %v1019
        %1037 = vst [vmem:[%s1023 + $0x288] sm:$0xff] %v1020
        %1038 = vst [vmem:[%s1023 + $0x2c0] sm:$0xff] %v1021
        %1039 = vst [vmem:[%s1023 + $0x2c8] sm:$0xff] %v1022
        %s1040 = ssub.s32 128, %s935
        %p1041 = scmp.lt.s32.totalorder %s1040, 0
        %s1042 = ssub.s32 0, %s1040
        %s1043 = scalar_select %p1041, %s1042, %s1040
        %s1044 = sand.u32 %s1043, 127
        %s1045 = ssub.s32 0, %s1044
        %s1046 = scalar_select %p1041, %s1045, %s1044
        %p1047 = scmp.ne.s32.totalorder %s1046, 0
        %p1048 = scmp.lt.s32.totalorder %s1046, 0
        %p1049 = pnand %p1048, %p1047
        %p1050 = pneg %p1049
        %s1051 = sadd.s32 %s1046, 128
        %s1052 = scalar_select %p1050, %s1051, %s1046
        %s1053 = sand.u32 %s1052, 127
        %s1054 = sand.u32 %s1053, 127
        %1055 = vrot.lane.b32.xlu0 %v233, %s1054
        %v1056 = vpop.permute.xlu0 %1055
        %1057 = vrot.lane.b32.xlu0 %v234, %s1054
        %v1058 = vpop.permute.xlu0 %1057
        %1059 = vrot.lane.b32.xlu0 %v235, %s1054
        %v1060 = vpop.permute.xlu0 %1059
        %1061 = vrot.lane.b32.xlu0 %v236, %s1054
        %v1062 = vpop.permute.xlu0 %1061
        %1063 = vrot.lane.b32.xlu0 %v237, %s1054
        %v1064 = vpop.permute.xlu0 %1063
        %1065 = vrot.lane.b32.xlu0 %v238, %s1054
        %v1066 = vpop.permute.xlu0 %1065
        %1067 = vrot.lane.b32.xlu0 %v239, %s1054
        %v1068 = vpop.permute.xlu0 %1067
        %1069 = vrot.lane.b32.xlu0 %v240, %s1054
        %v1070 = vpop.permute.xlu0 %1069
        %1071 = vrot.lane.b32.xlu0 %v241, %s1054
        %v1072 = vpop.permute.xlu0 %1071
        %1073 = vrot.lane.b32.xlu0 %v242, %s1054
        %v1074 = vpop.permute.xlu0 %1073
        %1075 = vrot.lane.b32.xlu0 %v243, %s1054
        %v1076 = vpop.permute.xlu0 %1075
        %1077 = vrot.lane.b32.xlu0 %v244, %s1054
        %v1078 = vpop.permute.xlu0 %1077
        %1079 = vrot.lane.b32.xlu0 %v245, %s1054
        %v1080 = vpop.permute.xlu0 %1079
        %1081 = vrot.lane.b32.xlu0 %v246, %s1054
        %v1082 = vpop.permute.xlu0 %1081
        %1083 = vrot.lane.b32.xlu0 %v247, %s1054
        %v1084 = vpop.permute.xlu0 %1083
        %1085 = vrot.lane.b32.xlu0 %v248, %s1054
        %v1086 = vpop.permute.xlu0 %1085
        %v1087 = vstv %s1040
        %vm1088 = vcmp.lt.s32.totalorder %v266, %v1087
        %v1089 = vsel %vm1088, 1, 0
        %vm1090 = vcmp.eq.s32.totalorder %v1089, 1
        %v1091 = vsel %vm1090, %v1056, 0.0
        %v1092 = vsel %vm1090, %v1058, 0.0
        %v1093 = vsel %vm1090, %v1060, 0.0
        %v1094 = vsel %vm1090, %v1062, 0.0
        %v1095 = vsel %vm1090, %v1064, 0.0
        %v1096 = vsel %vm1090, %v1066, 0.0
        %v1097 = vsel %vm1090, %v1068, 0.0
        %v1098 = vsel %vm1090, %v1070, 0.0
        %v1099 = vsel %vm1090, %v1072, 0.0
        %v1100 = vsel %vm1090, %v1074, 0.0
        %v1101 = vsel %vm1090, %v1076, 0.0
        %v1102 = vsel %vm1090, %v1078, 0.0
        %v1103 = vsel %vm1090, %v1080, 0.0
        %v1104 = vsel %vm1090, %v1082, 0.0
        %v1105 = vsel %vm1090, %v1084, 0.0
        %v1106 = vsel %vm1090, %v1086, 0.0
        %s1107 = scalar_lea.vmem %s226, 48 [#allocation10]
        %1108 = vst [vmem:[%s1107] sm:$0xff] %v1091
        %1109 = vst [vmem:[%s1107 + $0x8] sm:$0xff] %v1092
        %1110 = vst [vmem:[%s1107 + $0x40] sm:$0xff] %v1093
        %1111 = vst [vmem:[%s1107 + $0x48] sm:$0xff] %v1094
        %1112 = vst [vmem:[%s1107 + $0x80] sm:$0xff] %v1095
        %1113 = vst [vmem:[%s1107 + $0x88] sm:$0xff] %v1096
        %1114 = vst [vmem:[%s1107 + $0xc0] sm:$0xff] %v1097
        %1115 = vst [vmem:[%s1107 + $0xc8] sm:$0xff] %v1098
        %1116 = vst [vmem:[%s1107 + $0x200] sm:$0xff] %v1099
        %1117 = vst [vmem:[%s1107 + $0x208] sm:$0xff] %v1100
        %1118 = vst [vmem:[%s1107 + $0x240] sm:$0xff] %v1101
        %1119 = vst [vmem:[%s1107 + $0x248] sm:$0xff] %v1102
        %1120 = vst [vmem:[%s1107 + $0x280] sm:$0xff] %v1103
        %1121 = vst [vmem:[%s1107 + $0x288] sm:$0xff] %v1104
        %1122 = vst [vmem:[%s1107 + $0x2c0] sm:$0xff] %v1105
        %1123 = vst [vmem:[%s1107 + $0x2c8] sm:$0xff] %v1106
        %v1124 = vsel %vm1090, %v249, 0.0
        %v1125 = vsel %vm1090, %v250, 0.0
        %v1126 = vsel %vm1090, %v251, 0.0
        %v1127 = vsel %vm1090, %v252, 0.0
        %v1128 = vsel %vm1090, %v253, 0.0
        %v1129 = vsel %vm1090, %v254, 0.0
        %v1130 = vsel %vm1090, %v255, 0.0
        %v1131 = vsel %vm1090, %v256, 0.0
        %v1132 = vsel %vm1090, %v257, 0.0
        %v1133 = vsel %vm1090, %v258, 0.0
        %v1134 = vsel %vm1090, %v259, 0.0
        %v1135 = vsel %vm1090, %v260, 0.0
        %v1136 = vsel %vm1090, %v261, 0.0
        %v1137 = vsel %vm1090, %v262, 0.0
        %v1138 = vsel %vm1090, %v263, 0.0
        %v1139 = vsel %vm1090, %v264, 0.0
        %s1140 = scalar_lea.vmem %s226, 304 [#allocation10]
        %1141 = vst [vmem:[%s1140] sm:$0xff] %v1124
        %1142 = vst [vmem:[%s1140 + $0x8] sm:$0xff] %v1125
        %1143 = vst [vmem:[%s1140 + $0x40] sm:$0xff] %v1126
        %1144 = vst [vmem:[%s1140 + $0x48] sm:$0xff] %v1127
        %1145 = vst [vmem:[%s1140 + $0x80] sm:$0xff] %v1128
        %1146 = vst [vmem:[%s1140 + $0x88] sm:$0xff] %v1129
        %1147 = vst [vmem:[%s1140 + $0xc0] sm:$0xff] %v1130
        %1148 = vst [vmem:[%s1140 + $0xc8] sm:$0xff] %v1131
        %1149 = vst [vmem:[%s1140 + $0x200] sm:$0xff] %v1132
        %1150 = vst [vmem:[%s1140 + $0x208] sm:$0xff] %v1133
        %1151 = vst [vmem:[%s1140 + $0x240] sm:$0xff] %v1134
        %1152 = vst [vmem:[%s1140 + $0x248] sm:$0xff] %v1135
        %1153 = vst [vmem:[%s1140 + $0x280] sm:$0xff] %v1136
        %1154 = vst [vmem:[%s1140 + $0x288] sm:$0xff] %v1137
        %1155 = vst [vmem:[%s1140 + $0x2c0] sm:$0xff] %v1138
        %1156 = vst [vmem:[%s1140 + $0x2c8] sm:$0xff] %v1139
        %s1157 = sand.u32 %s102, 1
        %s1158 = scalar_lea.sflag [#allocation6], %s1157
        %s1159 = sand.u32 %s102, 1
        %s1160 = smul.addr %s1159, 1024
        %s1161 = scalar_lea.vmem [#allocation9], %s1160
        %s1162 = sand.u32 %s130, 1
        %s1163 = scalar_lea.sflag [#allocation11], %s1162
        %s1164 = sand.u32 %s130, 1
        %s1165 = smul.addr %s1164, 1024
        %s1166 = scalar_lea.vmem [#allocation10], %s1165
        // Predicated region
        $region37: #{tpu_custom_call.1} parent=27 // pred_check
          %p1167 = pneg %p112
        $region38: #{tpu_custom_call.1} parent=27 // pred_check_branch
          %1169 = sbr.rel (%p1167) target = $region40
        $region39: #{tpu_custom_call.1} parent=27 // pred_region
          #allocation13 [shape = 'u32[6]{0}', space=smem, size = 0x18, scoped, tag = 'DMA stride descriptor']
          %s1170 = smul.u32 4, %s33
          %s1171 = smul.u32 2, %s32
          %s1173 = ssub.s32 16384, 16384
          %1174 = vsyncadd %s1158, %s1173
          %s1175 = smul.addr %s1170, 2
          %s1176 = sadd.s32 %s1171, %s1175
          %s1177 = smul.addr %s1176, 128
          %s1178 = scalar_lea.hbm %s3, %s1177
          %s1180 = sshll.u32 1, 14
          %s1181 = sxor.u32 4294967295, %s1180
          %s1184 = sshll.u32 7, 18
          %s1185 = sxor.u32 4294967295, %s1184
          %s1186 = sand.u32 0, %s1185
          %s1188 = sor.u32 %s1186, 0
          %s1190 = sshll.u32 3, 24
          %s1191 = sxor.u32 4294967295, %s1190
          %s1192 = sand.u32 %s1188, %s1191
          %s1194 = sor.u32 %s1192, 0
          %s1195 = sshll.u32 %s1161, 4
          %s1196 = int_to_ptr.vmem [resolvable:$true] %s1195
          %1202 = sst [smem:[#allocation13]] 1024
          %s1203 = scalar_lea.smem [#allocation13], 1
          %1204 = sst [smem:[%s1203]] 2048
          %s1205 = scalar_lea.smem [#allocation13], 2
          %1206 = sst [smem:[%s1205]] 8
          %s1207 = scalar_lea.smem [#allocation13], 3
          %1208 = sst [smem:[%s1207]] 128
          %s1209 = scalar_lea.smem [#allocation13], 4
          %1210 = sst [smem:[%s1209]] 128
          %s1211 = scalar_lea.smem [#allocation13], 5
          %1212 = sst [smem:[%s1211]] 8
          %1214 = dma.general %s1196, 16384, %s1178, %s1158, [#allocation12], [#allocation13], %s1194, 0
        $region40: #{tpu_custom_call.1} parent=27 // pred_fallthru
          _
        // Predicated region
        $region41: #{tpu_custom_call.1} parent=27 // pred_check
          %p1215 = pneg %p140
        $region42: #{tpu_custom_call.1} parent=27 // pred_check_branch
          %1217 = sbr.rel (%p1215) target = $region44
        $region43: #{tpu_custom_call.1} parent=27 // pred_region
          #allocation15 [shape = 'u32[6]{0}', space=smem, size = 0x18, scoped, tag = 'DMA stride descriptor']
          %s1218 = smul.u32 4, %s33
          %s1219 = smul.u32 2, %s32
          %s1221 = ssub.s32 16384, 16384
          %1222 = vsyncadd %s1163, %s1221
          %s1223 = smul.addr %s1218, 2
          %s1224 = sadd.s32 %s1219, %s1223
          %s1225 = smul.addr %s1224, 128
          %s1226 = scalar_lea.hbm %s4, %s1225
          %s1228 = sshll.u32 1, 14
          %s1229 = sxor.u32 4294967295, %s1228
          %s1232 = sshll.u32 7, 18
          %s1233 = sxor.u32 4294967295, %s1232
          %s1234 = sand.u32 0, %s1233
          %s1236 = sor.u32 %s1234, 0
          %s1238 = sshll.u32 3, 24
          %s1239 = sxor.u32 4294967295, %s1238
          %s1240 = sand.u32 %s1236, %s1239
          %s1242 = sor.u32 %s1240, 0
          %s1243 = sshll.u32 %s1166, 4
          %s1244 = int_to_ptr.vmem [resolvable:$true] %s1243
          %1250 = sst [smem:[#allocation15]] 1024
          %s1251 = scalar_lea.smem [#allocation15], 1
          %1252 = sst [smem:[%s1251]] 2048
          %s1253 = scalar_lea.smem [#allocation15], 2
          %1254 = sst [smem:[%s1253]] 8
          %s1255 = scalar_lea.smem [#allocation15], 3
          %1256 = sst [smem:[%s1255]] 128
          %s1257 = scalar_lea.smem [#allocation15], 4
          %1258 = sst [smem:[%s1257]] 128
          %s1259 = scalar_lea.smem [#allocation15], 5
          %1260 = sst [smem:[%s1259]] 8
          %1262 = dma.general %s1244, 16384, %s1226, %s1163, [#allocation14], [#allocation15], %s1242, 0
        $region44: #{tpu_custom_call.1} parent=27 // pred_fallthru
          _
      $region28: #{tpu_custom_call.1} parent=5 // pred_fallthru
        _
      %p1263 = scmp.le.s32.totalorder 2, %s23
      // Predicated region
      $region45: #{tpu_custom_call.1} parent=5 // pred_check
        %p1264 = pneg %p1263
      $region46: #{tpu_custom_call.1} parent=5 // pred_check_branch
        %1266 = sbr.rel (%p1264) target = $region48
      $region47: #{tpu_custom_call.1} parent=5 // pred_region
        %s1267 = ssub.s32 %s23, 2
        // Predicated region
        $region49: #{tpu_custom_call.1} parent=47 // pred_check
          %p1268 = pneg %p118
        $region50: #{tpu_custom_call.1} parent=47 // pred_check_branch
          %1270 = sbr.rel (%p1268) target = $region52
        $region51: #{tpu_custom_call.1} parent=47 // pred_region
          %s1271 = sand.u32 %s103, 1
          %s1272 = scalar_lea.sflag [#allocation6], %s1271
          %s1273 = sand.u32 %s103, 1
          %s1274 = smul.addr %s1273, 1024
          %s1275 = scalar_lea.vmem [#allocation9], %s1274
          %1276 = dma.done %s1272, 16384
        $region52: #{tpu_custom_call.1} parent=47 // pred_fallthru
          _
        // Predicated region
        $region53: #{tpu_custom_call.1} parent=47 // pred_check
          %p1277 = pneg %p146
        $region54: #{tpu_custom_call.1} parent=47 // pred_check_branch
          %1279 = sbr.rel (%p1277) target = $region56
        $region55: #{tpu_custom_call.1} parent=47 // pred_region
          %s1280 = sand.u32 %s131, 1
          %s1281 = scalar_lea.sflag [#allocation11], %s1280
          %s1282 = sand.u32 %s131, 1
          %s1283 = smul.addr %s1282, 1024
          %s1284 = scalar_lea.vmem [#allocation10], %s1283
          %1285 = dma.done %s1281, 16384
        $region56: #{tpu_custom_call.1} parent=47 // pred_fallthru
          _
      $region48: #{tpu_custom_call.1} parent=5 // pred_fallthru
        _
    $region6: #{tpu_custom_call.1} parent=1 // loop_footer
      %s27 = sadd.s32 1, %s23
    $region7: #{tpu_custom_call.1} parent=1 // loop_footer_branch
      %22 = sbr.rel target = $region3
    $region8: #{tpu_custom_call.1} parent=1 // loop_exit
      _
    %1286 = vsyncpa [#allocation5], 1
    %s1287 = scalar_lea.sflag [#allocation5], 1
    %1288 = vsyncpa %s1287, 1
    %1289 = vsyncpa [#allocation8], 1
    %1290 = vsyncpa [#allocation6], 1
    %s1291 = scalar_lea.sflag [#allocation6], 1
    %1292 = vsyncpa %s1291, 1
    %1293 = vsyncpa [#allocation11], 1
    %s1294 = scalar_lea.sflag [#allocation11], 1
    %1295 = vsyncpa %s1294, 1

</llo_original>
